<compile_context>
chip_gen: v6e
topology: v6e:2x2x1
jax: 0.10.0
libtpu: 0.0.40
codegen_flags: <defaults>
</compile_context>

<pallas_src>
import functools

import jax
import jax.numpy as jnp
from jax import lax
from jax.experimental import pallas as pl
from jax.experimental.pallas import tpu as pltpu


def _round_up(x, m):
    return ((x + m - 1) // m) * m


def lstm_recurrence_kernel(x_ref, w_ih_ref, w_hh_ref, b_ref, w_lin_ref,
                           b_lin_ref, out_ref, h_ref, c_ref,
                           *, seq_len, out_reduce, unroll):
    """One time-chunk of the LSTM recurrence + (on the last chunk) the Linear.

    x_ref     : (Tt, B, I)   raw input chunk, time-major
    w_ih_ref  : (I, 4*Hp)    input->gates weight, transposed & gate-padded
    w_hh_ref  : (Hp, 4*Hp)   hidden->gates weight, transposed & zero-padded
    b_ref     : (1, 4*Hp)    combined bias b_ih + b_hh, gate-padded
    w_lin_ref : (1, Hp) if out_reduce else (Hp, O)
    b_lin_ref : (1, O)
    out_ref   : (B, O)       resident across the time grid; written on last chunk
    h_ref, c_ref : (B, Hp)   VMEM scratch carrying the recurrent state
    """
    t_blk = pl.program_id(0)
    Tt, B, I = x_ref.shape
    Hp = h_ref.shape[1]

    @pl.when(t_blk == 0)
    def _init():
        h_ref[...] = jnp.zeros_like(h_ref)
        c_ref[...] = jnp.zeros_like(c_ref)

    needs_mask = (seq_len % Tt) != 0          # static Python bool
    bias = b_ref[...]                          # loop-invariant, hoisted once
    small_i = I <= 8
    if small_i:
        # One (1, 4*Hp) row per input feature; tiny, stays resident.
        w_ih_rows = [w_ih_ref[ii:ii + 1, :] for ii in range(I)]
    else:
        w_ih_full = w_ih_ref[...]

    def step(t, carry):
        h, c = carry
        x_t = x_ref[t]                         # (B, I)

        # ---- input projection: independent of h -> off the recurrent
        # critical path; at I=1 this is a single broadcast multiply-add (VPU).
        if small_i:
            proj = bias
            for ii in range(I):
                proj = proj + x_t[:, ii:ii + 1] * w_ih_rows[ii]
        else:
            proj = bias + jnp.dot(x_t, w_ih_full,
                                  preferred_element_type=jnp.float32)

        # ---- recurrent path: four 128-aligned per-gate dots; each activation
        # fires as soon as its gate's result pops (PyTorch gate order i,f,g,o).
        def gate_pre(g):
            return proj[:, g * Hp:(g + 1) * Hp] + jnp.dot(
                h, w_hh_ref[:, g * Hp:(g + 1) * Hp],
                preferred_element_type=jnp.float32)

        i_g = jax.nn.sigmoid(gate_pre(0))
        f_g = jax.nn.sigmoid(gate_pre(1))
        g_g = jnp.tanh(gate_pre(2))
        o_g = jax.nn.sigmoid(gate_pre(3))
        c_new = f_g * c + i_g * g_g
        h_new = o_g * jnp.tanh(c_new)

        if needs_mask:
            # Zero-padded tail steps (global time index >= seq_len) must leave
            # the recurrent state untouched.
            keep = (t_blk * Tt + t) < seq_len
            h_new = jnp.where(keep, h_new, h)
            c_new = jnp.where(keep, c_new, c)
        return h_new, c_new

    # Partial unroll: enough visibility to overlap adjacent steps' MXU pops /
    # EUP pushes without blowing instruction memory for large chunks.
    h, c = lax.fori_loop(0, Tt, step, (h_ref[...], c_ref[...]), unroll=unroll)
    h_ref[...] = h
    c_ref[...] = c

    @pl.when(t_blk == pl.num_programs(0) - 1)
    def _finalize():
        if out_reduce:
            # output_size == 1: lane reduction instead of an N=1 MXU matmul.
            out = jnp.sum(h * w_lin_ref[...], axis=-1, keepdims=True)
        else:
            # Weight pre-transposed in the wrapper -> no in-kernel transpose.
            out = jnp.dot(h, w_lin_ref[...], preferred_element_type=jnp.float32)
        out_ref[...] = (out + b_lin_ref[...]).astype(out_ref.dtype)


@functools.partial(jax.jit, static_argnames=("time_chunk",))
def lstm_model_forward(x_btI, w_ih, w_hh, b_ih, b_hh, w_lin, b_lin,
                       *, time_chunk=None):
    """x_btI: (B, T, I) float32.  PyTorch-layout LSTM/Linear weights.

    Returns (B, O) predictions, matching LSTMModel.forward.
    """
    B, T, I = x_btI.shape
    H = w_hh.shape[1]          # w_hh is (4H, H) PyTorch layout
    O = w_lin.shape[0]         # w_lin is (O, H) PyTorch layout
    Hp = _round_up(H, 128)     # 128-lane aligned gate width
    f32 = jnp.float32

    if time_chunk is None:
        time_chunk = 128
    time_chunk = max(1, min(int(time_chunk), T))
    n_chunks = -(-T // time_chunk)
    T_pad = n_chunks * time_chunk

    # ---- one-time parameter packing (plain JAX, fused by XLA) -------------
    # (4H, I) -> (I, 4, H) -> zero-pad gate dim to Hp -> (I, 4*Hp)
    w_ih_p = jnp.pad(jnp.transpose(w_ih).astype(f32).reshape(I, 4, H),
                     ((0, 0), (0, 0), (0, Hp - H))).reshape(I, 4 * Hp)
    # (4H, H) -> (H, 4, H) -> zero-pad both H dims -> (Hp, 4*Hp)
    w_hh_p = jnp.pad(jnp.transpose(w_hh).astype(f32).reshape(H, 4, H),
                     ((0, Hp - H), (0, 0), (0, Hp - H))).reshape(Hp, 4 * Hp)
    b_p = jnp.pad((b_ih + b_hh).astype(f32).reshape(4, H),
                  ((0, 0), (0, Hp - H))).reshape(1, 4 * Hp)
    out_reduce = (O == 1)
    if out_reduce:
        w_lin_p = jnp.pad(w_lin.astype(f32), ((0, 0), (0, Hp - H)))   # (1, Hp)
    else:
        w_lin_p = jnp.pad(jnp.transpose(w_lin).astype(f32),
                          ((0, Hp - H), (0, 0)))                       # (Hp, O)
    b_lin_r = b_lin.astype(f32).reshape(1, O)

    # ---- raw input, time-major, zero-padded to a whole number of chunks ---
    # (transposing x is cheap: B*T*I elements, no 4*Hp-wide projection in HBM)
    x_tm = jnp.transpose(x_btI.astype(f32), (1, 0, 2))                 # (T,B,I)
    if T_pad != T:
        x_tm = jnp.pad(x_tm, ((0, T_pad - T), (0, 0), (0, 0)))

    kernel = functools.partial(
        lstm_recurrence_kernel,
        seq_len=T,
        out_reduce=out_reduce,
        unroll=min(8, time_chunk),
    )

    grid_spec = pltpu.PrefetchScalarGridSpec(
        num_scalar_prefetch=0,
        grid=(n_chunks,),
        in_specs=[
            # streamed, double-buffered raw-input time chunks
            pl.BlockSpec((time_chunk, B, I), lambda t: (t, 0, 0)),
            # weights / biases: constant block index -> fetched once, resident
            pl.BlockSpec((I, 4 * Hp), lambda t: (0, 0)),
            pl.BlockSpec((Hp, 4 * Hp), lambda t: (0, 0)),
            pl.BlockSpec((1, 4 * Hp), lambda t: (0, 0)),
            pl.BlockSpec(w_lin_p.shape, lambda t: (0, 0)),
            pl.BlockSpec((1, O), lambda t: (0, 0)),
        ],
        out_specs=pl.BlockSpec((B, O), lambda t: (0, 0)),
        scratch_shapes=[
            pltpu.VMEM((B, Hp), f32),   # h carry
            pltpu.VMEM((B, Hp), f32),   # c carry
        ],
    )

    return pl.pallas_call(
        kernel,
        out_shape=jax.ShapeDtypeStruct((B, O), f32),
        grid_spec=grid_spec,
        compiler_params=pltpu.CompilerParams(
            # the time axis carries the recurrence -> must run sequentially
            dimension_semantics=("arbitrary",),
            vmem_limit_bytes=32 * 1024 * 1024,
        ),
    )(x_tm, w_ih_p, w_hh_p, b_p, w_lin_p, b_lin_r)


def lstm_model_reference(x_btI, w_ih, w_hh, b_ih, b_hh, w_lin, b_lin):
    """Pure-JAX reference matching torch.nn.LSTM (batch_first) + Linear."""
    B, T, I = x_btI.shape
    H = w_hh.shape[1]
    h = jnp.zeros((B, H), jnp.float32)
    c = jnp.zeros((B, H), jnp.float32)
    for t in range(T):
        gates = x_btI[:, t, :] @ w_ih.T + h @ w_hh.T + b_ih + b_hh
        i_g = jax.nn.sigmoid(gates[:, 0 * H:1 * H])
        f_g = jax.nn.sigmoid(gates[:, 1 * H:2 * H])
        g_g = jnp.tanh(gates[:, 2 * H:3 * H])
        o_g = jax.nn.sigmoid(gates[:, 3 * H:4 * H])
        c = f_g * c + i_g * g_g
        h = o_g * jnp.tanh(c)
    return h @ w_lin.T + b_lin


if __name__ == "__main__":
    # Module defaults: input_size=1, hidden_layer_size=50, output_size=1.
    B, I, H, O = 2, 1, 50, 1

    key = jax.random.PRNGKey(0)
    kx, k1, k2, k3, k4, k5, k6 = jax.random.split(key, 7)

    # Deterministic synthetic parameters (PyTorch nn.LSTM / nn.Linear shapes).
    scale = 1.0 / jnp.sqrt(jnp.float32(H))
    w_ih = jax.random.uniform(k1, (4 * H, I), jnp.float32, -scale, scale)
    w_hh = jax.random.uniform(k2, (4 * H, H), jnp.float32, -scale, scale)
    b_ih = jax.random.uniform(k3, (4 * H,), jnp.float32, -scale, scale)
    b_hh = jax.random.uniform(k4, (4 * H,), jnp.float32, -scale, scale)
    w_lin = jax.random.uniform(k5, (O, H), jnp.float32, -scale, scale)
    b_lin = jax.random.uniform(k6, (O,), jnp.float32, -scale, scale)

    # Case 1: T divisible by the time chunk (multi-chunk, h/c carried across).
    T1 = 8
    x1 = jax.random.normal(kx, (B, T1, I), jnp.float32)
    out1 = jax.block_until_ready(
        lstm_model_forward(x1, w_ih, w_hh, b_ih, b_hh, w_lin, b_lin,
                           time_chunk=4))
    ref1 = lstm_model_reference(x1, w_ih, w_hh, b_ih, b_hh, w_lin, b_lin)
    assert out1.shape == (B, O), out1.shape
    assert jnp.allclose(out1, ref1, atol=1e-5, rtol=1e-5), (out1, ref1)

    # Case 2: awkward T (not divisible by the chunk) exercises the padded-tail
    # masking path introduced to avoid the chunk=1 fallback.
    T2 = 13
    x2 = jax.random.normal(jax.random.fold_in(kx, 1), (B, T2, I), jnp.float32)
    out2 = jax.block_until_ready(
        lstm_model_forward(x2, w_ih, w_hh, b_ih, b_hh, w_lin, b_lin,
                           time_chunk=4))
    ref2 = lstm_model_reference(x2, w_ih, w_hh, b_ih, b_hh, w_lin, b_lin)
    assert out2.shape == (B, O), out2.shape
    assert jnp.allclose(out2, ref2, atol=1e-5, rtol=1e-5), (out2, ref2)

    print("KERNEL_OK")
</pallas_src>

<mosaic_0001>
module attributes {stable_mosaic.version = 11 : i64} {
  func.func @lstm_recurrence_kernel(%arg0: i32, %arg1: memref<4x2x1xf32, #tpu.memory_space<vmem>>, %arg2: memref<1x512xf32, #tpu.memory_space<vmem>>, %arg3: memref<128x512xf32, #tpu.memory_space<vmem>>, %arg4: memref<1x512xf32, #tpu.memory_space<vmem>>, %arg5: memref<1x128xf32, #tpu.memory_space<vmem>>, %arg6: memref<1x1xf32, #tpu.memory_space<vmem>>, %arg7: memref<2x1xf32, #tpu.memory_space<vmem>>, %arg8: memref<2x128xf32, #tpu.memory_space<vmem>>, %arg9: memref<2x128xf32, #tpu.memory_space<vmem>>) attributes {dimension_semantics = [#tpu.dimension_semantics<arbitrary>], iteration_bounds = array<i64: 2>, scalar_prefetch = 0 : i64, scratch_operands = 2 : i64, tpu.core_type = #tpu.core_type<tc>, window_params = [{transform_indices = @transform_0, window_bounds = array<i64: 4, 2, 1>}, {pipeline_mode = #tpu.pipeline_mode<synchronous>, transform_indices = @transform_1, window_bounds = array<i64: 1, 512>}, {pipeline_mode = #tpu.pipeline_mode<synchronous>, transform_indices = @transform_2, window_bounds = array<i64: 128, 512>}, {pipeline_mode = #tpu.pipeline_mode<synchronous>, transform_indices = @transform_3, window_bounds = array<i64: 1, 512>}, {pipeline_mode = #tpu.pipeline_mode<synchronous>, transform_indices = @transform_4, window_bounds = array<i64: 1, 128>}, {pipeline_mode = #tpu.pipeline_mode<synchronous>, transform_indices = @transform_5, window_bounds = array<i64: 1, 1>}, {pipeline_mode = #tpu.pipeline_mode<synchronous>, transform_indices = @transform_6, window_bounds = array<i64: 2, 1>}]} {
    %c0_i32 = arith.constant 0 : i32
    %0 = arith.cmpi eq, %arg0, %c0_i32 : i32
    %1 = arith.extui %0 : i1 to i32
    %c0_i32_0 = arith.constant 0 : i32
    %2 = arith.cmpi ne, %1, %c0_i32_0 : i32
    scf.if %2 {
      %cst_79 = arith.constant 0.000000e+00 : f32
      %192 = vector.broadcast %cst_79 : f32 to vector<2x128xf32>
      %c0_80 = arith.constant 0 : index
      %c0_81 = arith.constant 0 : index
      %193 = vector.load %arg8[%c0_80, %c0_81] : memref<2x128xf32, #tpu.memory_space<vmem>>, vector<2x128xf32>
      tpu.vector_store %arg8[%c0_80, %c0_81], %192 {strides = array<i32>} : memref<2x128xf32, #tpu.memory_space<vmem>>, vector<2x128xf32>,
      %cst_82 = arith.constant 0.000000e+00 : f32
      %194 = vector.broadcast %cst_82 : f32 to vector<2x128xf32>
      %c0_83 = arith.constant 0 : index
      %c0_84 = arith.constant 0 : index
      %195 = vector.load %arg9[%c0_83, %c0_84] : memref<2x128xf32, #tpu.memory_space<vmem>>, vector<2x128xf32>
      tpu.vector_store %arg9[%c0_83, %c0_84], %194 {strides = array<i32>} : memref<2x128xf32, #tpu.memory_space<vmem>>, vector<2x128xf32>,
    } else {
    }
    %c0 = arith.constant 0 : index
    %c0_1 = arith.constant 0 : index
    %3 = vector.load %arg4[%c0, %c0_1] : memref<1x512xf32, #tpu.memory_space<vmem>>, vector<1x512xf32>
    %c0_2 = arith.constant 0 : index
    %c0_3 = arith.constant 0 : index
    %4 = vector.load %arg2[%c0_2, %c0_3] : memref<1x512xf32, #tpu.memory_space<vmem>>, vector<1x512xf32>
    %c0_4 = arith.constant 0 : index
    %c0_5 = arith.constant 0 : index
    %5 = vector.load %arg8[%c0_4, %c0_5] : memref<2x128xf32, #tpu.memory_space<vmem>>, vector<2x128xf32>
    %c0_6 = arith.constant 0 : index
    %c0_7 = arith.constant 0 : index
    %6 = vector.load %arg9[%c0_6, %c0_7] : memref<2x128xf32, #tpu.memory_space<vmem>>, vector<2x128xf32>
    %c0_i32_8 = arith.constant 0 : i32
    %7 = arith.index_cast %c0_i32_8 : i32 to index
    %c0_9 = arith.constant 0 : index
    %c0_10 = arith.constant 0 : index
    %8 = vector.load %arg1[%7, %c0_9, %c0_10] : memref<4x2x1xf32, #tpu.memory_space<vmem>>, vector<1x2x1xf32>
    %9 = vector.shape_cast %8 : vector<1x2x1xf32> to vector<2x1xf32>
    %10 = vector.broadcast %9 : vector<2x1xf32> to vector<2x512xf32>
    %11 = vector.broadcast %4 : vector<1x512xf32> to vector<2x512xf32>
    %12 = arith.mulf %10, %11 : vector<2x512xf32>
    %13 = vector.broadcast %3 : vector<1x512xf32> to vector<2x512xf32>
    %14 = arith.addf %13, %12 : vector<2x512xf32>
    %15 = vector.extract_strided_slice %14 {offsets = [0, 0], sizes = [2, 128], strides = [1, 1]} : vector<2x512xf32> to vector<2x128xf32>
    %c0_11 = arith.constant 0 : index
    %c0_12 = arith.constant 0 : index
    %16 = vector.load %arg3[%c0_11, %c0_12] : memref<128x512xf32, #tpu.memory_space<vmem>>, vector<128x128xf32>
    %cst = arith.constant dense<0.000000e+00> : vector<2x128xf32>
    %17 = tpu.matmul %5, %16, %cst {dimension_numbers = #tpu.dot_dimension_numbers<[1], [0], [0], [1], [0, 0, 1, 1], [], []>} : vector<2x128xf32>, vector<128x128xf32>, vector<2x128xf32> -> vector<2x128xf32>
    %18 = arith.addf %15, %17 : vector<2x128xf32>
    %19 = arith.negf %18 : vector<2x128xf32>
    %20 = math.exp %19 : vector<2x128xf32>
    %cst_13 = arith.constant 1.000000e+00 : f32
    %21 = vector.broadcast %cst_13 : f32 to vector<2x128xf32>
    %22 = arith.addf %21, %20 : vector<2x128xf32>
    %23 = arith.divf %21, %22 : vector<2x128xf32>
    %24 = vector.extract_strided_slice %14 {offsets = [0, 128], sizes = [2, 128], strides = [1, 1]} : vector<2x512xf32> to vector<2x128xf32>
    %c0_14 = arith.constant 0 : index
    %c128 = arith.constant 128 : index
    %25 = vector.load %arg3[%c0_14, %c128] : memref<128x512xf32, #tpu.memory_space<vmem>>, vector<128x128xf32>
    %cst_15 = arith.constant dense<0.000000e+00> : vector<2x128xf32>
    %26 = tpu.matmul %5, %25, %cst_15 {dimension_numbers = #tpu.dot_dimension_numbers<[1], [0], [0], [1], [0, 0, 1, 1], [], []>} : vector<2x128xf32>, vector<128x128xf32>, vector<2x128xf32> -> vector<2x128xf32>
    %27 = arith.addf %24, %26 : vector<2x128xf32>
    %28 = arith.negf %27 : vector<2x128xf32>
    %29 = math.exp %28 : vector<2x128xf32>
    %cst_16 = arith.constant 1.000000e+00 : f32
    %30 = vector.broadcast %cst_16 : f32 to vector<2x128xf32>
    %31 = arith.addf %30, %29 : vector<2x128xf32>
    %32 = arith.divf %30, %31 : vector<2x128xf32>
    %33 = vector.extract_strided_slice %14 {offsets = [0, 256], sizes = [2, 128], strides = [1, 1]} : vector<2x512xf32> to vector<2x128xf32>
    %c0_17 = arith.constant 0 : index
    %c256 = arith.constant 256 : index
    %34 = vector.load %arg3[%c0_17, %c256] : memref<128x512xf32, #tpu.memory_space<vmem>>, vector<128x128xf32>
    %cst_18 = arith.constant dense<0.000000e+00> : vector<2x128xf32>
    %35 = tpu.matmul %5, %34, %cst_18 {dimension_numbers = #tpu.dot_dimension_numbers<[1], [0], [0], [1], [0, 0, 1, 1], [], []>} : vector<2x128xf32>, vector<128x128xf32>, vector<2x128xf32> -> vector<2x128xf32>
    %36 = arith.addf %33, %35 : vector<2x128xf32>
    %37 = math.tanh %36 : vector<2x128xf32>
    %38 = vector.extract_strided_slice %14 {offsets = [0, 384], sizes = [2, 128], strides = [1, 1]} : vector<2x512xf32> to vector<2x128xf32>
    %c0_19 = arith.constant 0 : index
    %c384 = arith.constant 384 : index
    %39 = vector.load %arg3[%c0_19, %c384] : memref<128x512xf32, #tpu.memory_space<vmem>>, vector<128x128xf32>
    %cst_20 = arith.constant dense<0.000000e+00> : vector<2x128xf32>
    %40 = tpu.matmul %5, %39, %cst_20 {dimension_numbers = #tpu.dot_dimension_numbers<[1], [0], [0], [1], [0, 0, 1, 1], [], []>} : vector<2x128xf32>, vector<128x128xf32>, vector<2x128xf32> -> vector<2x128xf32>
    %41 = arith.addf %38, %40 : vector<2x128xf32>
    %42 = arith.negf %41 : vector<2x128xf32>
    %43 = math.exp %42 : vector<2x128xf32>
    %cst_21 = arith.constant 1.000000e+00 : f32
    %44 = vector.broadcast %cst_21 : f32 to vector<2x128xf32>
    %45 = arith.addf %44, %43 : vector<2x128xf32>
    %46 = arith.divf %44, %45 : vector<2x128xf32>
    %47 = arith.mulf %32, %6 : vector<2x128xf32>
    %48 = arith.mulf %23, %37 : vector<2x128xf32>
    %49 = arith.addf %47, %48 : vector<2x128xf32>
    %50 = math.tanh %49 : vector<2x128xf32>
    %51 = arith.mulf %46, %50 : vector<2x128xf32>
    %c1_i32 = arith.constant 1 : i32
    %52 = arith.index_cast %c1_i32 : i32 to index
    %c0_22 = arith.constant 0 : index
    %c0_23 = arith.constant 0 : index
    %53 = vector.load %arg1[%52, %c0_22, %c0_23] : memref<4x2x1xf32, #tpu.memory_space<vmem>>, vector<1x2x1xf32>
    %54 = vector.shape_cast %53 : vector<1x2x1xf32> to vector<2x1xf32>
    %55 = vector.broadcast %54 : vector<2x1xf32> to vector<2x512xf32>
    %56 = vector.broadcast %4 : vector<1x512xf32> to vector<2x512xf32>
    %57 = arith.mulf %55, %56 : vector<2x512xf32>
    %58 = vector.broadcast %3 : vector<1x512xf32> to vector<2x512xf32>
    %59 = arith.addf %58, %57 : vector<2x512xf32>
    %60 = vector.extract_strided_slice %59 {offsets = [0, 0], sizes = [2, 128], strides = [1, 1]} : vector<2x512xf32> to vector<2x128xf32>
    %c0_24 = arith.constant 0 : index
    %c0_25 = arith.constant 0 : index
    %61 = vector.load %arg3[%c0_24, %c0_25] : memref<128x512xf32, #tpu.memory_space<vmem>>, vector<128x128xf32>
    %cst_26 = arith.constant dense<0.000000e+00> : vector<2x128xf32>
    %62 = tpu.matmul %51, %61, %cst_26 {dimension_numbers = #tpu.dot_dimension_numbers<[1], [0], [0], [1], [0, 0, 1, 1], [], []>} : vector<2x128xf32>, vector<128x128xf32>, vector<2x128xf32> -> vector<2x128xf32>
    %63 = arith.addf %60, %62 : vector<2x128xf32>
    %64 = arith.negf %63 : vector<2x128xf32>
    %65 = math.exp %64 : vector<2x128xf32>
    %cst_27 = arith.constant 1.000000e+00 : f32
    %66 = vector.broadcast %cst_27 : f32 to vector<2x128xf32>
    %67 = arith.addf %66, %65 : vector<2x128xf32>
    %68 = arith.divf %66, %67 : vector<2x128xf32>
    %69 = vector.extract_strided_slice %59 {offsets = [0, 128], sizes = [2, 128], strides = [1, 1]} : vector<2x512xf32> to vector<2x128xf32>
    %c0_28 = arith.constant 0 : index
    %c128_29 = arith.constant 128 : index
    %70 = vector.load %arg3[%c0_28, %c128_29] : memref<128x512xf32, #tpu.memory_space<vmem>>, vector<128x128xf32>
    %cst_30 = arith.constant dense<0.000000e+00> : vector<2x128xf32>
    %71 = tpu.matmul %51, %70, %cst_30 {dimension_numbers = #tpu.dot_dimension_numbers<[1], [0], [0], [1], [0, 0, 1, 1], [], []>} : vector<2x128xf32>, vector<128x128xf32>, vector<2x128xf32> -> vector<2x128xf32>
    %72 = arith.addf %69, %71 : vector<2x128xf32>
    %73 = arith.negf %72 : vector<2x128xf32>
    %74 = math.exp %73 : vector<2x128xf32>
    %cst_31 = arith.constant 1.000000e+00 : f32
    %75 = vector.broadcast %cst_31 : f32 to vector<2x128xf32>
    %76 = arith.addf %75, %74 : vector<2x128xf32>
    %77 = arith.divf %75, %76 : vector<2x128xf32>
    %78 = vector.extract_strided_slice %59 {offsets = [0, 256], sizes = [2, 128], strides = [1, 1]} : vector<2x512xf32> to vector<2x128xf32>
    %c0_32 = arith.constant 0 : index
    %c256_33 = arith.constant 256 : index
    %79 = vector.load %arg3[%c0_32, %c256_33] : memref<128x512xf32, #tpu.memory_space<vmem>>, vector<128x128xf32>
    %cst_34 = arith.constant dense<0.000000e+00> : vector<2x128xf32>
    %80 = tpu.matmul %51, %79, %cst_34 {dimension_numbers = #tpu.dot_dimension_numbers<[1], [0], [0], [1], [0, 0, 1, 1], [], []>} : vector<2x128xf32>, vector<128x128xf32>, vector<2x128xf32> -> vector<2x128xf32>
    %81 = arith.addf %78, %80 : vector<2x128xf32>
    %82 = math.tanh %81 : vector<2x128xf32>
    %83 = vector.extract_strided_slice %59 {offsets = [0, 384], sizes = [2, 128], strides = [1, 1]} : vector<2x512xf32> to vector<2x128xf32>
    %c0_35 = arith.constant 0 : index
    %c384_36 = arith.constant 384 : index
    %84 = vector.load %arg3[%c0_35, %c384_36] : memref<128x512xf32, #tpu.memory_space<vmem>>, vector<128x128xf32>
    %cst_37 = arith.constant dense<0.000000e+00> : vector<2x128xf32>
    %85 = tpu.matmul %51, %84, %cst_37 {dimension_numbers = #tpu.dot_dimension_numbers<[1], [0], [0], [1], [0, 0, 1, 1], [], []>} : vector<2x128xf32>, vector<128x128xf32>, vector<2x128xf32> -> vector<2x128xf32>
    %86 = arith.addf %83, %85 : vector<2x128xf32>
    %87 = arith.negf %86 : vector<2x128xf32>
    %88 = math.exp %87 : vector<2x128xf32>
    %cst_38 = arith.constant 1.000000e+00 : f32
    %89 = vector.broadcast %cst_38 : f32 to vector<2x128xf32>
    %90 = arith.addf %89, %88 : vector<2x128xf32>
    %91 = arith.divf %89, %90 : vector<2x128xf32>
    %92 = arith.mulf %77, %49 : vector<2x128xf32>
    %93 = arith.mulf %68, %82 : vector<2x128xf32>
    %94 = arith.addf %92, %93 : vector<2x128xf32>
    %95 = math.tanh %94 : vector<2x128xf32>
    %96 = arith.mulf %91, %95 : vector<2x128xf32>
    %c2_i32 = arith.constant 2 : i32
    %97 = arith.index_cast %c2_i32 : i32 to index
    %c0_39 = arith.constant 0 : index
    %c0_40 = arith.constant 0 : index
    %98 = vector.load %arg1[%97, %c0_39, %c0_40] : memref<4x2x1xf32, #tpu.memory_space<vmem>>, vector<1x2x1xf32>
    %99 = vector.shape_cast %98 : vector<1x2x1xf32> to vector<2x1xf32>
    %100 = vector.broadcast %99 : vector<2x1xf32> to vector<2x512xf32>
    %101 = vector.broadcast %4 : vector<1x512xf32> to vector<2x512xf32>
    %102 = arith.mulf %100, %101 : vector<2x512xf32>
    %103 = vector.broadcast %3 : vector<1x512xf32> to vector<2x512xf32>
    %104 = arith.addf %103, %102 : vector<2x512xf32>
    %105 = vector.extract_strided_slice %104 {offsets = [0, 0], sizes = [2, 128], strides = [1, 1]} : vector<2x512xf32> to vector<2x128xf32>
    %c0_41 = arith.constant 0 : index
    %c0_42 = arith.constant 0 : index
    %106 = vector.load %arg3[%c0_41, %c0_42] : memref<128x512xf32, #tpu.memory_space<vmem>>, vector<128x128xf32>
    %cst_43 = arith.constant dense<0.000000e+00> : vector<2x128xf32>
    %107 = tpu.matmul %96, %106, %cst_43 {dimension_numbers = #tpu.dot_dimension_numbers<[1], [0], [0], [1], [0, 0, 1, 1], [], []>} : vector<2x128xf32>, vector<128x128xf32>, vector<2x128xf32> -> vector<2x128xf32>
    %108 = arith.addf %105, %107 : vector<2x128xf32>
    %109 = arith.negf %108 : vector<2x128xf32>
    %110 = math.exp %109 : vector<2x128xf32>
    %cst_44 = arith.constant 1.000000e+00 : f32
    %111 = vector.broadcast %cst_44 : f32 to vector<2x128xf32>
    %112 = arith.addf %111, %110 : vector<2x128xf32>
    %113 = arith.divf %111, %112 : vector<2x128xf32>
    %114 = vector.extract_strided_slice %104 {offsets = [0, 128], sizes = [2, 128], strides = [1, 1]} : vector<2x512xf32> to vector<2x128xf32>
    %c0_45 = arith.constant 0 : index
    %c128_46 = arith.constant 128 : index
    %115 = vector.load %arg3[%c0_45, %c128_46] : memref<128x512xf32, #tpu.memory_space<vmem>>, vector<128x128xf32>
    %cst_47 = arith.constant dense<0.000000e+00> : vector<2x128xf32>
    %116 = tpu.matmul %96, %115, %cst_47 {dimension_numbers = #tpu.dot_dimension_numbers<[1], [0], [0], [1], [0, 0, 1, 1], [], []>} : vector<2x128xf32>, vector<128x128xf32>, vector<2x128xf32> -> vector<2x128xf32>
    %117 = arith.addf %114, %116 : vector<2x128xf32>
    %118 = arith.negf %117 : vector<2x128xf32>
    %119 = math.exp %118 : vector<2x128xf32>
    %cst_48 = arith.constant 1.000000e+00 : f32
    %120 = vector.broadcast %cst_48 : f32 to vector<2x128xf32>
    %121 = arith.addf %120, %119 : vector<2x128xf32>
    %122 = arith.divf %120, %121 : vector<2x128xf32>
    %123 = vector.extract_strided_slice %104 {offsets = [0, 256], sizes = [2, 128], strides = [1, 1]} : vector<2x512xf32> to vector<2x128xf32>
    %c0_49 = arith.constant 0 : index
    %c256_50 = arith.constant 256 : index
    %124 = vector.load %arg3[%c0_49, %c256_50] : memref<128x512xf32, #tpu.memory_space<vmem>>, vector<128x128xf32>
    %cst_51 = arith.constant dense<0.000000e+00> : vector<2x128xf32>
    %125 = tpu.matmul %96, %124, %cst_51 {dimension_numbers = #tpu.dot_dimension_numbers<[1], [0], [0], [1], [0, 0, 1, 1], [], []>} : vector<2x128xf32>, vector<128x128xf32>, vector<2x128xf32> -> vector<2x128xf32>
    %126 = arith.addf %123, %125 : vector<2x128xf32>
    %127 = math.tanh %126 : vector<2x128xf32>
    %128 = vector.extract_strided_slice %104 {offsets = [0, 384], sizes = [2, 128], strides = [1, 1]} : vector<2x512xf32> to vector<2x128xf32>
    %c0_52 = arith.constant 0 : index
    %c384_53 = arith.constant 384 : index
    %129 = vector.load %arg3[%c0_52, %c384_53] : memref<128x512xf32, #tpu.memory_space<vmem>>, vector<128x128xf32>
    %cst_54 = arith.constant dense<0.000000e+00> : vector<2x128xf32>
    %130 = tpu.matmul %96, %129, %cst_54 {dimension_numbers = #tpu.dot_dimension_numbers<[1], [0], [0], [1], [0, 0, 1, 1], [], []>} : vector<2x128xf32>, vector<128x128xf32>, vector<2x128xf32> -> vector<2x128xf32>
    %131 = arith.addf %128, %130 : vector<2x128xf32>
    %132 = arith.negf %131 : vector<2x128xf32>
    %133 = math.exp %132 : vector<2x128xf32>
    %cst_55 = arith.constant 1.000000e+00 : f32
    %134 = vector.broadcast %cst_55 : f32 to vector<2x128xf32>
    %135 = arith.addf %134, %133 : vector<2x128xf32>
    %136 = arith.divf %134, %135 : vector<2x128xf32>
    %137 = arith.mulf %122, %94 : vector<2x128xf32>
    %138 = arith.mulf %113, %127 : vector<2x128xf32>
    %139 = arith.addf %137, %138 : vector<2x128xf32>
    %140 = math.tanh %139 : vector<2x128xf32>
    %141 = arith.mulf %136, %140 : vector<2x128xf32>
    %c3_i32 = arith.constant 3 : i32
    %142 = arith.index_cast %c3_i32 : i32 to index
    %c0_56 = arith.constant 0 : index
    %c0_57 = arith.constant 0 : index
    %143 = vector.load %arg1[%142, %c0_56, %c0_57] : memref<4x2x1xf32, #tpu.memory_space<vmem>>, vector<1x2x1xf32>
    %144 = vector.shape_cast %143 : vector<1x2x1xf32> to vector<2x1xf32>
    %145 = vector.broadcast %144 : vector<2x1xf32> to vector<2x512xf32>
    %146 = vector.broadcast %4 : vector<1x512xf32> to vector<2x512xf32>
    %147 = arith.mulf %145, %146 : vector<2x512xf32>
    %148 = vector.broadcast %3 : vector<1x512xf32> to vector<2x512xf32>
    %149 = arith.addf %148, %147 : vector<2x512xf32>
    %150 = vector.extract_strided_slice %149 {offsets = [0, 0], sizes = [2, 128], strides = [1, 1]} : vector<2x512xf32> to vector<2x128xf32>
    %c0_58 = arith.constant 0 : index
    %c0_59 = arith.constant 0 : index
    %151 = vector.load %arg3[%c0_58, %c0_59] : memref<128x512xf32, #tpu.memory_space<vmem>>, vector<128x128xf32>
    %cst_60 = arith.constant dense<0.000000e+00> : vector<2x128xf32>
    %152 = tpu.matmul %141, %151, %cst_60 {dimension_numbers = #tpu.dot_dimension_numbers<[1], [0], [0], [1], [0, 0, 1, 1], [], []>} : vector<2x128xf32>, vector<128x128xf32>, vector<2x128xf32> -> vector<2x128xf32>
    %153 = arith.addf %150, %152 : vector<2x128xf32>
    %154 = arith.negf %153 : vector<2x128xf32>
    %155 = math.exp %154 : vector<2x128xf32>
    %cst_61 = arith.constant 1.000000e+00 : f32
    %156 = vector.broadcast %cst_61 : f32 to vector<2x128xf32>
    %157 = arith.addf %156, %155 : vector<2x128xf32>
    %158 = arith.divf %156, %157 : vector<2x128xf32>
    %159 = vector.extract_strided_slice %149 {offsets = [0, 128], sizes = [2, 128], strides = [1, 1]} : vector<2x512xf32> to vector<2x128xf32>
    %c0_62 = arith.constant 0 : index
    %c128_63 = arith.constant 128 : index
    %160 = vector.load %arg3[%c0_62, %c128_63] : memref<128x512xf32, #tpu.memory_space<vmem>>, vector<128x128xf32>
    %cst_64 = arith.constant dense<0.000000e+00> : vector<2x128xf32>
    %161 = tpu.matmul %141, %160, %cst_64 {dimension_numbers = #tpu.dot_dimension_numbers<[1], [0], [0], [1], [0, 0, 1, 1], [], []>} : vector<2x128xf32>, vector<128x128xf32>, vector<2x128xf32> -> vector<2x128xf32>
    %162 = arith.addf %159, %161 : vector<2x128xf32>
    %163 = arith.negf %162 : vector<2x128xf32>
    %164 = math.exp %163 : vector<2x128xf32>
    %cst_65 = arith.constant 1.000000e+00 : f32
    %165 = vector.broadcast %cst_65 : f32 to vector<2x128xf32>
    %166 = arith.addf %165, %164 : vector<2x128xf32>
    %167 = arith.divf %165, %166 : vector<2x128xf32>
    %168 = vector.extract_strided_slice %149 {offsets = [0, 256], sizes = [2, 128], strides = [1, 1]} : vector<2x512xf32> to vector<2x128xf32>
    %c0_66 = arith.constant 0 : index
    %c256_67 = arith.constant 256 : index
    %169 = vector.load %arg3[%c0_66, %c256_67] : memref<128x512xf32, #tpu.memory_space<vmem>>, vector<128x128xf32>
    %cst_68 = arith.constant dense<0.000000e+00> : vector<2x128xf32>
    %170 = tpu.matmul %141, %169, %cst_68 {dimension_numbers = #tpu.dot_dimension_numbers<[1], [0], [0], [1], [0, 0, 1, 1], [], []>} : vector<2x128xf32>, vector<128x128xf32>, vector<2x128xf32> -> vector<2x128xf32>
    %171 = arith.addf %168, %170 : vector<2x128xf32>
    %172 = math.tanh %171 : vector<2x128xf32>
    %173 = vector.extract_strided_slice %149 {offsets = [0, 384], sizes = [2, 128], strides = [1, 1]} : vector<2x512xf32> to vector<2x128xf32>
    %c0_69 = arith.constant 0 : index
    %c384_70 = arith.constant 384 : index
    %174 = vector.load %arg3[%c0_69, %c384_70] : memref<128x512xf32, #tpu.memory_space<vmem>>, vector<128x128xf32>
    %cst_71 = arith.constant dense<0.000000e+00> : vector<2x128xf32>
    %175 = tpu.matmul %141, %174, %cst_71 {dimension_numbers = #tpu.dot_dimension_numbers<[1], [0], [0], [1], [0, 0, 1, 1], [], []>} : vector<2x128xf32>, vector<128x128xf32>, vector<2x128xf32> -> vector<2x128xf32>
    %176 = arith.addf %173, %175 : vector<2x128xf32>
    %177 = arith.negf %176 : vector<2x128xf32>
    %178 = math.exp %177 : vector<2x128xf32>
    %cst_72 = arith.constant 1.000000e+00 : f32
    %179 = vector.broadcast %cst_72 : f32 to vector<2x128xf32>
    %180 = arith.addf %179, %178 : vector<2x128xf32>
    %181 = arith.divf %179, %180 : vector<2x128xf32>
    %182 = arith.mulf %167, %139 : vector<2x128xf32>
    %183 = arith.mulf %158, %172 : vector<2x128xf32>
    %184 = arith.addf %182, %183 : vector<2x128xf32>
    %185 = math.tanh %184 : vector<2x128xf32>
    %186 = arith.mulf %181, %185 : vector<2x128xf32>
    %c4_i32 = arith.constant 4 : i32
    %c0_73 = arith.constant 0 : index
    %c0_74 = arith.constant 0 : index
    %187 = vector.load %arg8[%c0_73, %c0_74] : memref<2x128xf32, #tpu.memory_space<vmem>>, vector<2x128xf32>
    tpu.vector_store %arg8[%c0_73, %c0_74], %186 {strides = array<i32>} : memref<2x128xf32, #tpu.memory_space<vmem>>, vector<2x128xf32>,
    %c0_75 = arith.constant 0 : index
    %c0_76 = arith.constant 0 : index
    %188 = vector.load %arg9[%c0_75, %c0_76] : memref<2x128xf32, #tpu.memory_space<vmem>>, vector<2x128xf32>
    tpu.vector_store %arg9[%c0_75, %c0_76], %184 {strides = array<i32>} : memref<2x128xf32, #tpu.memory_space<vmem>>, vector<2x128xf32>,
    %c1_i32_77 = arith.constant 1 : i32
    %189 = arith.cmpi eq, %arg0, %c1_i32_77 : i32
    %190 = arith.extui %189 : i1 to i32
    %c0_i32_78 = arith.constant 0 : i32
    %191 = arith.cmpi ne, %190, %c0_i32_78 : i32
    scf.if %191 {
      %c0_79 = arith.constant 0 : index
      %c0_80 = arith.constant 0 : index
      %192 = vector.load %arg5[%c0_79, %c0_80] : memref<1x128xf32, #tpu.memory_space<vmem>>, vector<1x128xf32>
      %193 = vector.broadcast %192 : vector<1x128xf32> to vector<2x128xf32>
      %194 = arith.mulf %186, %193 : vector<2x128xf32>
      %cst_81 = arith.constant dense<0.000000e+00> : vector<2xf32>
      %195 = vector.multi_reduction <add>, %194, %cst_81 [1] : vector<2x128xf32> to vector<2xf32>
      %196 = vector.shape_cast %195 : vector<2xf32> to vector<2x1xf32>
      %c0_82 = arith.constant 0 : index
      %c0_83 = arith.constant 0 : index
      %197 = vector.load %arg6[%c0_82, %c0_83] : memref<1x1xf32, #tpu.memory_space<vmem>>, vector<1x1xf32>
      %198 = vector.broadcast %197 : vector<1x1xf32> to vector<2x1xf32>
      %199 = arith.addf %196, %198 : vector<2x1xf32>
      %c0_84 = arith.constant 0 : index
      %c0_85 = arith.constant 0 : index
      %200 = vector.load %arg7[%c0_84, %c0_85] : memref<2x1xf32, #tpu.memory_space<vmem>>, vector<2x1xf32>
      tpu.vector_store %arg7[%c0_84, %c0_85], %199 {strides = array<i32>} : memref<2x1xf32, #tpu.memory_space<vmem>>, vector<2x1xf32>,
    } else {
    }
    return
  }
  func.func @transform_0(%arg0: i32) -> (i32, i32, i32) {
    %c0_i32 = arith.constant 0 : i32
    %c0_i32_0 = arith.constant 0 : i32
    %c0_i32_1 = arith.constant 0 : i32
    return %arg0, %c0_i32, %c0_i32_0 : i32, i32, i32
  }
  func.func @transform_1(%arg0: i32) -> (i32, i32) {
    %c0_i32 = arith.constant 0 : i32
    %c0_i32_0 = arith.constant 0 : i32
    %c0_i32_1 = arith.constant 0 : i32
    return %c0_i32, %c0_i32_0 : i32, i32
  }
  func.func @transform_2(%arg0: i32) -> (i32, i32) {
    %c0_i32 = arith.constant 0 : i32
    %c0_i32_0 = arith.constant 0 : i32
    %c0_i32_1 = arith.constant 0 : i32
    return %c0_i32, %c0_i32_0 : i32, i32
  }
  func.func @transform_3(%arg0: i32) -> (i32, i32) {
    %c0_i32 = arith.constant 0 : i32
    %c0_i32_0 = arith.constant 0 : i32
    %c0_i32_1 = arith.constant 0 : i32
    return %c0_i32, %c0_i32_0 : i32, i32
  }
  func.func @transform_4(%arg0: i32) -> (i32, i32) {
    %c0_i32 = arith.constant 0 : i32
    %c0_i32_0 = arith.constant 0 : i32
    %c0_i32_1 = arith.constant 0 : i32
    return %c0_i32, %c0_i32_0 : i32, i32
  }
  func.func @transform_5(%arg0: i32) -> (i32, i32) {
    %c0_i32 = arith.constant 0 : i32
    %c0_i32_0 = arith.constant 0 : i32
    %c0_i32_1 = arith.constant 0 : i32
    return %c0_i32, %c0_i32_0 : i32, i32
  }
  func.func @transform_6(%arg0: i32) -> (i32, i32) {
    %c0_i32 = arith.constant 0 : i32
    %c0_i32_0 = arith.constant 0 : i32
    %c0_i32_1 = arith.constant 0 : i32
    return %c0_i32, %c0_i32_0 : i32, i32
  }
}

</mosaic_0001>

<llo_original>
// kernel: lstm_model_forward.1
$region0: #{lstm_model_forward.1}
  #allocation0 [shape = 'u32[]', space=smem, size = 0x4, offset = 0x4, fixed_abs, tag = 'smem constant byte address 0x4 - core index']
  #allocation1 [shape = 'u32[144,128]{1,0:T(1,128)}', space=vmem, size = 0x12000, scoped, tag = 'internal scratch']
  #allocation2 [shape = 'f32[2,128]{1,0:T(2,128)}', space=vmem, size = 0x400, scoped, tag = 'scratch operand']
  #allocation3 [shape = 'f32[2,128]{1,0:T(2,128)}', space=vmem, size = 0x400, scoped, tag = 'scratch operand']
  #allocation4 [shape = 'f32[1,1]{1,0:T(1,128)S(1)}', space=vmem, size = 0x200, scoped, tag = 'scoped memory for lstm_model_forward.1']
  %s0 = inlined_call_operand.vmem [shape: f32[8,2,1], index: 0, kind: input, shape index: {}]
  %s1 = inlined_call_operand.vmem [shape: f32[1,512], index: 1, kind: input, shape index: {}]
  %s2 = inlined_call_operand.vmem [shape: f32[128,512], index: 2, kind: input, shape index: {}]
  %s3 = inlined_call_operand.vmem [shape: f32[1,512], index: 3, kind: input, shape index: {}]
  %s4 = inlined_call_operand.vmem [shape: f32[1,128], index: 4, kind: input, shape index: {}]
  %s5 = inlined_call_operand.<no memory space> [shape: f32[1,1], index: 5, kind: input, shape index: {}]
  %s6 = inlined_call_operand.vmem [shape: f32[2,1], index: 6, kind: output, shape index: {}]
  %s7 = sld [smem:[#allocation0]]
  $region65: #{lstm_model_forward.1} parent=0
    _
  %s9 = ssub.s32 1, %s7
  %s10 = scalar_select 0, %s9, %s7
  %v11 = vstv %s5
  %12 = vst [vmem:[#allocation4] sm:$0x1] %v11
  loop: start=0, step=1, limit=4
  $region2: #{lstm_model_forward.1} parent=0 // loop_pre_header
    _
  $region3: #{lstm_model_forward.1} parent=0 // loop_header
    %s14 = sphi 0, %s18
    %p15 = scmp.ge.s32.totalorder %s14, 4
    %s24 = sphi 0, %s26
    %s27 = sphi 0, %s24
    %s28 = sphi 0, %s27
    %s44 = sphi 0, %s28
    %s48 = sphi 0, %s48
    %s50 = sphi 0, %s48
    %s51 = sphi 0, %s50
    %s65 = sphi 0, %s51
    %s69 = sphi 0, %s69
    %s71 = sphi 0, %s69
    %s72 = sphi 0, %s71
    %s86 = sphi 0, %s72
    %s90 = sphi 0, %s90
    %s92 = sphi 0, %s90
    %s93 = sphi 0, %s92
    %s107 = sphi 0, %s93
    %s111 = sphi 0, %s111
    %s113 = sphi 0, %s111
    %s114 = sphi 0, %s113
    %s128 = sphi 0, %s114
    %s132 = sphi 0, %s132
    %s134 = sphi 0, %s132
    %s135 = sphi 0, %s134
    %s149 = sphi 0, %s135
    %s153 = sphi 0, %s153
    %s155 = sphi 0, %s153
    %s156 = sphi 0, %s155
    %s170 = sphi 0, %s156
  $region4: #{lstm_model_forward.1} parent=0 // loop_header_branch
    %17 = sbr.rel (%p15) target = $region8
  $region5: #{lstm_model_forward.1} parent=0 // loop_body
    %s19 = ssub.s32 %s14, 1
    %s20 = ssub.s32 %s14, 2
    %s21 = sadd.s32 %s14, 1
    %s22 = ssub.s32 %s14, %s21
    %p23 = scmp.eq.s32.totalorder %s22, 0
    %s25 = sadd.s32 %s24, 1
    %s26 = scalar_select %p23, %s24, %s25
    %p29 = pneg %p23
    %p30 = scmp.eq.s32.totalorder %s14, 1
    %p31 = por %p29, %p30
    %p32 = scmp.ne.s32.totalorder %s24, %s27
    %p33 = scmp.eq.s32.totalorder %s14, 0
    %p34 = por %p32, %p33
    %p35 = scmp.ne.s32.totalorder %s24, %s27
    %p36 = scmp.eq.s32.totalorder %s19, 1
    %p37 = por %p35, %p36
    %p38 = scmp.ne.s32.totalorder %s27, %s28
    %p39 = scmp.eq.s32.totalorder %s19, 0
    %p40 = por %p38, %p39
    %p41 = scmp.ne.s32.totalorder %s27, %s28
    %p42 = scmp.eq.s32.totalorder %s20, 1
    %p43 = por %p41, %p42
    %p45 = scmp.ne.s32.totalorder %s28, %s44
    %p46 = scmp.eq.s32.totalorder %s20, 0
    %p47 = por %p45, %p46
    %s49 = sadd.s32 %s48, 1
    %p52 = scmp.eq.s32.totalorder %s14, 1
    %p53 = scmp.ne.s32.totalorder %s48, %s50
    %p54 = scmp.eq.s32.totalorder %s14, 0
    %p55 = por %p53, %p54
    %p56 = scmp.ne.s32.totalorder %s48, %s50
    %p57 = scmp.eq.s32.totalorder %s19, 1
    %p58 = por %p56, %p57
    %p59 = scmp.ne.s32.totalorder %s50, %s51
    %p60 = scmp.eq.s32.totalorder %s19, 0
    %p61 = por %p59, %p60
    %p62 = scmp.ne.s32.totalorder %s50, %s51
    %p63 = scmp.eq.s32.totalorder %s20, 1
    %p64 = por %p62, %p63
    %p66 = scmp.ne.s32.totalorder %s51, %s65
    %p67 = scmp.eq.s32.totalorder %s20, 0
    %p68 = por %p66, %p67
    %s70 = sadd.s32 %s69, 1
    %p73 = scmp.eq.s32.totalorder %s14, 1
    %p74 = scmp.ne.s32.totalorder %s69, %s71
    %p75 = scmp.eq.s32.totalorder %s14, 0
    %p76 = por %p74, %p75
    %p77 = scmp.ne.s32.totalorder %s69, %s71
    %p78 = scmp.eq.s32.totalorder %s19, 1
    %p79 = por %p77, %p78
    %p80 = scmp.ne.s32.totalorder %s71, %s72
    %p81 = scmp.eq.s32.totalorder %s19, 0
    %p82 = por %p80, %p81
    %p83 = scmp.ne.s32.totalorder %s71, %s72
    %p84 = scmp.eq.s32.totalorder %s20, 1
    %p85 = por %p83, %p84
    %p87 = scmp.ne.s32.totalorder %s72, %s86
    %p88 = scmp.eq.s32.totalorder %s20, 0
    %p89 = por %p87, %p88
    %s91 = sadd.s32 %s90, 1
    %p94 = scmp.eq.s32.totalorder %s14, 1
    %p95 = scmp.ne.s32.totalorder %s90, %s92
    %p96 = scmp.eq.s32.totalorder %s14, 0
    %p97 = por %p95, %p96
    %p98 = scmp.ne.s32.totalorder %s90, %s92
    %p99 = scmp.eq.s32.totalorder %s19, 1
    %p100 = por %p98, %p99
    %p101 = scmp.ne.s32.totalorder %s92, %s93
    %p102 = scmp.eq.s32.totalorder %s19, 0
    %p103 = por %p101, %p102
    %p104 = scmp.ne.s32.totalorder %s92, %s93
    %p105 = scmp.eq.s32.totalorder %s20, 1
    %p106 = por %p104, %p105
    %p108 = scmp.ne.s32.totalorder %s93, %s107
    %p109 = scmp.eq.s32.totalorder %s20, 0
    %p110 = por %p108, %p109
    %s112 = sadd.s32 %s111, 1
    %p115 = scmp.eq.s32.totalorder %s14, 1
    %p116 = scmp.ne.s32.totalorder %s111, %s113
    %p117 = scmp.eq.s32.totalorder %s14, 0
    %p118 = por %p116, %p117
    %p119 = scmp.ne.s32.totalorder %s111, %s113
    %p120 = scmp.eq.s32.totalorder %s19, 1
    %p121 = por %p119, %p120
    %p122 = scmp.ne.s32.totalorder %s113, %s114
    %p123 = scmp.eq.s32.totalorder %s19, 0
    %p124 = por %p122, %p123
    %p125 = scmp.ne.s32.totalorder %s113, %s114
    %p126 = scmp.eq.s32.totalorder %s20, 1
    %p127 = por %p125, %p126
    %p129 = scmp.ne.s32.totalorder %s114, %s128
    %p130 = scmp.eq.s32.totalorder %s20, 0
    %p131 = por %p129, %p130
    %s133 = sadd.s32 %s132, 1
    %p136 = scmp.eq.s32.totalorder %s14, 1
    %p137 = scmp.ne.s32.totalorder %s132, %s134
    %p138 = scmp.eq.s32.totalorder %s14, 0
    %p139 = por %p137, %p138
    %p140 = scmp.ne.s32.totalorder %s132, %s134
    %p141 = scmp.eq.s32.totalorder %s19, 1
    %p142 = por %p140, %p141
    %p143 = scmp.ne.s32.totalorder %s134, %s135
    %p144 = scmp.eq.s32.totalorder %s19, 0
    %p145 = por %p143, %p144
    %p146 = scmp.ne.s32.totalorder %s134, %s135
    %p147 = scmp.eq.s32.totalorder %s20, 1
    %p148 = por %p146, %p147
    %p150 = scmp.ne.s32.totalorder %s135, %s149
    %p151 = scmp.eq.s32.totalorder %s20, 0
    %p152 = por %p150, %p151
    %s154 = sadd.s32 %s153, 1
    %p157 = scmp.eq.s32.totalorder %s14, 1
    %p158 = scmp.ne.s32.totalorder %s153, %s155
    %p159 = scmp.eq.s32.totalorder %s14, 0
    %p160 = por %p158, %p159
    %p161 = scmp.ne.s32.totalorder %s153, %s155
    %p162 = scmp.eq.s32.totalorder %s19, 1
    %p163 = por %p161, %p162
    %p164 = scmp.ne.s32.totalorder %s155, %s156
    %p165 = scmp.eq.s32.totalorder %s19, 0
    %p166 = por %p164, %p165
    %p167 = scmp.ne.s32.totalorder %s155, %s156
    %p168 = scmp.eq.s32.totalorder %s20, 1
    %p169 = por %p167, %p168
    %p171 = scmp.ne.s32.totalorder %s156, %s170
    %p172 = scmp.eq.s32.totalorder %s20, 0
    %p173 = por %p171, %p172
    %p174 = scmp.le.s32.totalorder 1, %s14
    %p175 = scmp.lt.s32.totalorder %s14, 3
    %p176 = pnand %p174, %p175
    %p177 = pneg %p176
    // Predicated region
    $region9: #{lstm_model_forward.1} parent=5 // pred_check
      _
    $region10: #{lstm_model_forward.1} parent=5 // pred_check_branch
      %179 = sbr.rel (%p176) target = $region12
    $region11: #{lstm_model_forward.1} parent=5 // pred_region
      %s180 = ssub.s32 %s14, 1
      // Predicated region
      $region13: #{lstm_model_forward.1} parent=11 // pred_check
        %p181 = pneg %p61
      $region14: #{lstm_model_forward.1} parent=11 // pred_check_branch
        %183 = sbr.rel (%p181) target = $region16
      $region15: #{lstm_model_forward.1} parent=11 // pred_region
        _
      $region16: #{lstm_model_forward.1} parent=11 // pred_fallthru
        _
      // Predicated region
      $region17: #{lstm_model_forward.1} parent=11 // pred_check
        %p184 = pneg %p82
      $region18: #{lstm_model_forward.1} parent=11 // pred_check_branch
        %186 = sbr.rel (%p184) target = $region20
      $region19: #{lstm_model_forward.1} parent=11 // pred_region
        _
      $region20: #{lstm_model_forward.1} parent=11 // pred_fallthru
        _
      // Predicated region
      $region21: #{lstm_model_forward.1} parent=11 // pred_check
        %p187 = pneg %p103
      $region22: #{lstm_model_forward.1} parent=11 // pred_check_branch
        %189 = sbr.rel (%p187) target = $region24
      $region23: #{lstm_model_forward.1} parent=11 // pred_region
        _
      $region24: #{lstm_model_forward.1} parent=11 // pred_fallthru
        _
      // Predicated region
      $region25: #{lstm_model_forward.1} parent=11 // pred_check
        %p190 = pneg %p124
      $region26: #{lstm_model_forward.1} parent=11 // pred_check_branch
        %192 = sbr.rel (%p190) target = $region28
      $region27: #{lstm_model_forward.1} parent=11 // pred_region
        _
      $region28: #{lstm_model_forward.1} parent=11 // pred_fallthru
        _
      // Predicated region
      $region29: #{lstm_model_forward.1} parent=11 // pred_check
        %p193 = pneg %p145
      $region30: #{lstm_model_forward.1} parent=11 // pred_check_branch
        %195 = sbr.rel (%p193) target = $region32
      $region31: #{lstm_model_forward.1} parent=11 // pred_region
        _
      $region32: #{lstm_model_forward.1} parent=11 // pred_fallthru
        _
    $region12: #{lstm_model_forward.1} parent=5 // pred_fallthru
      _
    %p196 = scmp.lt.s32.totalorder %s14, 2
    // Predicated region
    $region33: #{lstm_model_forward.1} parent=5 // pred_check
      %p197 = pneg %p196
    $region34: #{lstm_model_forward.1} parent=5 // pred_check_branch
      %199 = sbr.rel (%p197) target = $region36
    $region35: #{lstm_model_forward.1} parent=5 // pred_region
      // Predicated region
      $region37: #{lstm_model_forward.1} parent=35 // pred_check
        %p200 = pneg %p34
      $region38: #{lstm_model_forward.1} parent=35 // pred_check_branch
        %202 = sbr.rel (%p200) target = $region40
      $region39: #{lstm_model_forward.1} parent=35 // pred_region
        %s203 = smul.u32 4, %s14
        %p204 = scmp.lt.s32.totalorder %s203, 7
        %s205 = scalar_select %p204, %s203, 7
        %s206 = smul.addr %s205, 2
        %s207 = scalar_lea.vmem %s0, %s206
        %s208 = smul.u32 4, %s14
      $region40: #{lstm_model_forward.1} parent=35 // pred_fallthru
        _
    $region36: #{lstm_model_forward.1} parent=5 // pred_fallthru
      _
    %p209 = scmp.le.s32.totalorder 1, %s14
    %p210 = scmp.lt.s32.totalorder %s14, 3
    %p211 = pnand %p209, %p210
    %p212 = pneg %p211
    // Predicated region
    $region41: #{lstm_model_forward.1} parent=5 // pred_check
      _
    $region42: #{lstm_model_forward.1} parent=5 // pred_check_branch
      %214 = sbr.rel (%p211) target = $region44
    $region43: #{lstm_model_forward.1} parent=5 // pred_region
      %s215 = ssub.s32 %s14, 1
      %s216 = smul.u32 4, %s19
      %p217 = scmp.lt.s32.totalorder %s216, 7
      %s218 = scalar_select %p217, %s216, 7
      %s219 = smul.addr %s218, 2
      %s220 = scalar_lea.vmem %s0, %s219
      %p221 = pneg %p40
      %p222 = pneg %p37
      %p223 = pneg %p61
      %p224 = pneg %p58
      %p225 = pneg %p82
      %p226 = pneg %p79
      %p227 = pneg %p103
      %p228 = pneg %p100
      %p229 = pneg %p124
      %p230 = pneg %p121
      %p231 = pneg %p145
      %p232 = pneg %p142
      %p233 = pneg %p166
      %p234 = pneg %p163
      %s235 = smul.u32 4, %s19
      %p236 = scmp.lt.s32.totalorder %s235, 7
      %s237 = scalar_select %p236, %s235, 7
      %s238 = smul.addr %s237, 2
      %s239 = scalar_lea.vmem %s0, %s238
      %s240 = smul.u32 4, %s19
      %p241 = scmp.eq.s32.totalorder %s19, 0
      // Predicated region
      $region45: #{lstm_model_forward.1} parent=43 // pred_check
        %p242 = pneg %p241
      $region46: #{lstm_model_forward.1} parent=43 // pred_check_branch
        %244 = sbr.rel (%p242) target = $region48
      $region47: #{lstm_model_forward.1} parent=43 // pred_region
        %245 = vst [vmem:[#allocation2] sm:$0x3] 0.0
        %246 = vst [vmem:[#allocation3] sm:$0x3] 0.0
      $region48: #{lstm_model_forward.1} parent=43 // pred_fallthru
        _
      %v247 = vld [vmem:[%s3] sm:$0xf]
      %v248 = vld [vmem:[%s1] sm:$0xf]
      %v249 = vld [vmem:[#allocation2] sm:$0x3]
      %v250 = vld [vmem:[#allocation3] sm:$0x3]
      %v251 = vld [vmem:[%s239] sm:$0x3]
      %253 = vset.pattern.permute.xlu0 0
      %254 = vperm.xlu0 %253, %v251
      %v255 = vpop.permute.xlu0 %254
      %v258 = vlaneseq
      %v259 = vshrl.u32 %v258, 7
      %v260 = vsub.s32 0, %v259
      %v261 = vrot.slane %v248, %v260
      %v262 = vlaneseq
      %v263 = vshrl.u32 %v262, 7
      %v264 = vsub.s32 1, %v263
      %v265 = vrot.slane %v248, %v264
      %v266 = vlaneseq
      %v267 = vshrl.u32 %v266, 7
      %v268 = vsub.s32 2, %v267
      %v269 = vrot.slane %v248, %v268
      %v270 = vlaneseq
      %v271 = vshrl.u32 %v270, 7
      %v272 = vsub.s32 3, %v271
      %v273 = vrot.slane %v248, %v272
      %v278 = vmul.f32 %v255, %v261
      %v279 = vmul.f32 %v255, %v265
      %v280 = vmul.f32 %v255, %v269
      %v281 = vmul.f32 %v255, %v273
      %v283 = vlaneseq
      %v284 = vshrl.u32 %v283, 7
      %v285 = vsub.s32 0, %v284
      %v286 = vrot.slane %v247, %v285
      %v287 = vlaneseq
      %v288 = vshrl.u32 %v287, 7
      %v289 = vsub.s32 1, %v288
      %v290 = vrot.slane %v247, %v289
      %v291 = vlaneseq
      %v292 = vshrl.u32 %v291, 7
      %v293 = vsub.s32 2, %v292
      %v294 = vrot.slane %v247, %v293
      %v295 = vlaneseq
      %v296 = vshrl.u32 %v295, 7
      %v297 = vsub.s32 3, %v296
      %v298 = vrot.slane %v247, %v297
      %v303 = vadd.f32 %v286, %v278
      %v304 = vadd.f32 %v290, %v279
      %v305 = vadd.f32 %v294, %v280
      %v306 = vadd.f32 %v298, %v281
      %v307 = vld [vmem:[%s2] sm:$0xff]
      %v308 = vld [vmem:[%s2 + $0x20] sm:$0xff]
      %v309 = vld [vmem:[%s2 + $0x40] sm:$0xff]
      %v310 = vld [vmem:[%s2 + $0x60] sm:$0xff]
      %v311 = vld [vmem:[%s2 + $0x80] sm:$0xff]
      %v312 = vld [vmem:[%s2 + $0xa0] sm:$0xff]
      %v313 = vld [vmem:[%s2 + $0xc0] sm:$0xff]
      %v314 = vld [vmem:[%s2 + $0xe0] sm:$0xff]
      %v315 = vld [vmem:[%s2 + $0x100] sm:$0xff]
      %v316 = vld [vmem:[%s2 + $0x120] sm:$0xff]
      %v317 = vld [vmem:[%s2 + $0x140] sm:$0xff]
      %v318 = vld [vmem:[%s2 + $0x160] sm:$0xff]
      %v319 = vld [vmem:[%s2 + $0x180] sm:$0xff]
      %v320 = vld [vmem:[%s2 + $0x1a0] sm:$0xff]
      %v321 = vld [vmem:[%s2 + $0x1c0] sm:$0xff]
      %v322 = vld [vmem:[%s2 + $0x1e0] sm:$0xff]
      %323 = vmatprep.subr.mxu0 0.0
      %324 = vmatpush1.msra.mxu0 %v322
      %325 = vmatprep.subr.mxu0 0.0
      %326 = vmatpush1.msra.mxu0 %v321
      %327 = vmatprep.subr.mxu0 0.0
      %328 = vmatpush1.msra.mxu0 %v320
      %329 = vmatprep.subr.mxu0 0.0
      %330 = vmatpush1.msra.mxu0 %v319
      %331 = vmatprep.subr.mxu0 0.0
      %332 = vmatpush1.msra.mxu0 %v318
      %333 = vmatprep.subr.mxu0 0.0
      %334 = vmatpush1.msra.mxu0 %v317
      %335 = vmatprep.subr.mxu0 0.0
      %336 = vmatpush1.msra.mxu0 %v316
      %337 = vmatprep.subr.mxu0 0.0
      %338 = vmatpush1.msra.mxu0 %v315
      %339 = vmatprep.subr.mxu0 0.0
      %340 = vmatpush1.msra.mxu0 %v314
      %341 = vmatprep.subr.mxu0 0.0
      %342 = vmatpush1.msra.mxu0 %v313
      %343 = vmatprep.subr.mxu0 0.0
      %344 = vmatpush1.msra.mxu0 %v312
      %345 = vmatprep.subr.mxu0 0.0
      %346 = vmatpush1.msra.mxu0 %v311
      %347 = vmatprep.subr.mxu0 0.0
      %348 = vmatpush1.msra.mxu0 %v310
      %349 = vmatprep.subr.mxu0 0.0
      %350 = vmatpush1.msra.mxu0 %v309
      %351 = vmatprep.subr.mxu0 0.0
      %352 = vmatpush1.msra.mxu0 %v308
      %353 = vmatprep.subr.mxu0 0.0
      %354 = vmatpush1.msra.mxu0 %v307
      %355 = vmatprep.subr.mxu0 0.0
      %356 = vmatpush2.msra.mxu0 0.0
      %357 = vmatprep.subr.mxu0 0.0
      %358 = vmatpush2.msra.mxu0 0.0
      %359 = vmatprep.subr.mxu0 0.0
      %360 = vmatpush2.msra.mxu0 0.0
      %361 = vmatprep.subr.mxu0 0.0
      %362 = vmatpush2.msra.mxu0 0.0
      %363 = vmatprep.subr.mxu0 0.0
      %364 = vmatpush2.msra.mxu0 0.0
      %365 = vmatprep.subr.mxu0 0.0
      %366 = vmatpush2.msra.mxu0 0.0
      %367 = vmatprep.subr.mxu0 0.0
      %368 = vmatpush2.msra.mxu0 0.0
      %369 = vmatprep.subr.mxu0 0.0
      %370 = vmatpush2.msra.mxu0 0.0
      %371 = vmatprep.subr.mxu0 0.0
      %372 = vmatpush2.msra.mxu0 0.0
      %373 = vmatprep.subr.mxu0 0.0
      %374 = vmatpush2.msra.mxu0 0.0
      %375 = vmatprep.subr.mxu0 0.0
      %376 = vmatpush2.msra.mxu0 0.0
      %377 = vmatprep.subr.mxu0 0.0
      %378 = vmatpush2.msra.mxu0 0.0
      %379 = vmatprep.subr.mxu0 0.0
      %380 = vmatpush2.msra.mxu0 0.0
      %381 = vmatprep.subr.mxu0 0.0
      %382 = vmatpush2.msra.mxu0 0.0
      %383 = vmatprep.subr.mxu0 0.0
      %384 = vmatpush2.msra.mxu0 0.0
      %385 = vmatprep.subr.mxu0 0.0
      %386 = vmatpush2.msra.mxu0 0.0
      %387 = vmatprep.mubr.f32.mxu0 0.0
      %388 = vmatmul.mubr.f32.gmra.mxu0 %v249
      %v389 = vpop.f32.mrf.mxu0
      %v390 = vadd.f32 0.0, %v389
      %v391 = vpop.f32.mrf.mxu0
      %392 = vdwg.mxu0
      %v393 = vadd.f32 %v303, %v390
      %v394 = vxor.u32 %v393, 2147483648
      %v395 = vmul.f32 %v394, 1.442695
      %v396 = vpow.pop %v395
      %v397 = vadd.f32 %v396, 1.0
      %v398 = vrcp.pop %v397
      %v399 = vmul.f32 1.0, %v398
      %v400 = vld [vmem:[%s2 + $0x8] sm:$0xff]
      %v401 = vld [vmem:[%s2 + $0x28] sm:$0xff]
      %v402 = vld [vmem:[%s2 + $0x48] sm:$0xff]
      %v403 = vld [vmem:[%s2 + $0x68] sm:$0xff]
      %v404 = vld [vmem:[%s2 + $0x88] sm:$0xff]
      %v405 = vld [vmem:[%s2 + $0xa8] sm:$0xff]
      %v406 = vld [vmem:[%s2 + $0xc8] sm:$0xff]
      %v407 = vld [vmem:[%s2 + $0xe8] sm:$0xff]
      %v408 = vld [vmem:[%s2 + $0x108] sm:$0xff]
      %v409 = vld [vmem:[%s2 + $0x128] sm:$0xff]
      %v410 = vld [vmem:[%s2 + $0x148] sm:$0xff]
      %v411 = vld [vmem:[%s2 + $0x168] sm:$0xff]
      %v412 = vld [vmem:[%s2 + $0x188] sm:$0xff]
      %v413 = vld [vmem:[%s2 + $0x1a8] sm:$0xff]
      %v414 = vld [vmem:[%s2 + $0x1c8] sm:$0xff]
      %v415 = vld [vmem:[%s2 + $0x1e8] sm:$0xff]
      %416 = vmatprep.subr.mxu0 0.0
      %417 = vmatpush1.msra.mxu0 %v415
      %418 = vmatprep.subr.mxu0 0.0
      %419 = vmatpush1.msra.mxu0 %v414
      %420 = vmatprep.subr.mxu0 0.0
      %421 = vmatpush1.msra.mxu0 %v413
      %422 = vmatprep.subr.mxu0 0.0
      %423 = vmatpush1.msra.mxu0 %v412
      %424 = vmatprep.subr.mxu0 0.0
      %425 = vmatpush1.msra.mxu0 %v411
      %426 = vmatprep.subr.mxu0 0.0
      %427 = vmatpush1.msra.mxu0 %v410
      %428 = vmatprep.subr.mxu0 0.0
      %429 = vmatpush1.msra.mxu0 %v409
      %430 = vmatprep.subr.mxu0 0.0
      %431 = vmatpush1.msra.mxu0 %v408
      %432 = vmatprep.subr.mxu0 0.0
      %433 = vmatpush1.msra.mxu0 %v407
      %434 = vmatprep.subr.mxu0 0.0
      %435 = vmatpush1.msra.mxu0 %v406
      %436 = vmatprep.subr.mxu0 0.0
      %437 = vmatpush1.msra.mxu0 %v405
      %438 = vmatprep.subr.mxu0 0.0
      %439 = vmatpush1.msra.mxu0 %v404
      %440 = vmatprep.subr.mxu0 0.0
      %441 = vmatpush1.msra.mxu0 %v403
      %442 = vmatprep.subr.mxu0 0.0
      %443 = vmatpush1.msra.mxu0 %v402
      %444 = vmatprep.subr.mxu0 0.0
      %445 = vmatpush1.msra.mxu0 %v401
      %446 = vmatprep.subr.mxu0 0.0
      %447 = vmatpush1.msra.mxu0 %v400
      %448 = vmatprep.subr.mxu0 0.0
      %449 = vmatpush2.msra.mxu0 0.0
      %450 = vmatprep.subr.mxu0 0.0
      %451 = vmatpush2.msra.mxu0 0.0
      %452 = vmatprep.subr.mxu0 0.0
      %453 = vmatpush2.msra.mxu0 0.0
      %454 = vmatprep.subr.mxu0 0.0
      %455 = vmatpush2.msra.mxu0 0.0
      %456 = vmatprep.subr.mxu0 0.0
      %457 = vmatpush2.msra.mxu0 0.0
      %458 = vmatprep.subr.mxu0 0.0
      %459 = vmatpush2.msra.mxu0 0.0
      %460 = vmatprep.subr.mxu0 0.0
      %461 = vmatpush2.msra.mxu0 0.0
      %462 = vmatprep.subr.mxu0 0.0
      %463 = vmatpush2.msra.mxu0 0.0
      %464 = vmatprep.subr.mxu0 0.0
      %465 = vmatpush2.msra.mxu0 0.0
      %466 = vmatprep.subr.mxu0 0.0
      %467 = vmatpush2.msra.mxu0 0.0
      %468 = vmatprep.subr.mxu0 0.0
      %469 = vmatpush2.msra.mxu0 0.0
      %470 = vmatprep.subr.mxu0 0.0
      %471 = vmatpush2.msra.mxu0 0.0
      %472 = vmatprep.subr.mxu0 0.0
      %473 = vmatpush2.msra.mxu0 0.0
      %474 = vmatprep.subr.mxu0 0.0
      %475 = vmatpush2.msra.mxu0 0.0
      %476 = vmatprep.subr.mxu0 0.0
      %477 = vmatpush2.msra.mxu0 0.0
      %478 = vmatprep.subr.mxu0 0.0
      %479 = vmatpush2.msra.mxu0 0.0
      %480 = vmatprep.mubr.f32.mxu0 0.0
      %481 = vmatmul.mubr.f32.gmra.mxu0 %v249
      %v482 = vpop.f32.mrf.mxu0
      %v483 = vadd.f32 0.0, %v482
      %v484 = vpop.f32.mrf.mxu0
      %485 = vdwg.mxu0
      %v486 = vadd.f32 %v304, %v483
      %v487 = vxor.u32 %v486, 2147483648
      %v488 = vmul.f32 %v487, 1.442695
      %v489 = vpow.pop %v488
      %v490 = vadd.f32 %v489, 1.0
      %v491 = vrcp.pop %v490
      %v492 = vmul.f32 1.0, %v491
      %v493 = vld [vmem:[%s2 + $0x10] sm:$0xff]
      %v494 = vld [vmem:[%s2 + $0x30] sm:$0xff]
      %v495 = vld [vmem:[%s2 + $0x50] sm:$0xff]
      %v496 = vld [vmem:[%s2 + $0x70] sm:$0xff]
      %v497 = vld [vmem:[%s2 + $0x90] sm:$0xff]
      %v498 = vld [vmem:[%s2 + $0xb0] sm:$0xff]
      %v499 = vld [vmem:[%s2 + $0xd0] sm:$0xff]
      %v500 = vld [vmem:[%s2 + $0xf0] sm:$0xff]
      %v501 = vld [vmem:[%s2 + $0x110] sm:$0xff]
      %v502 = vld [vmem:[%s2 + $0x130] sm:$0xff]
      %v503 = vld [vmem:[%s2 + $0x150] sm:$0xff]
      %v504 = vld [vmem:[%s2 + $0x170] sm:$0xff]
      %v505 = vld [vmem:[%s2 + $0x190] sm:$0xff]
      %v506 = vld [vmem:[%s2 + $0x1b0] sm:$0xff]
      %v507 = vld [vmem:[%s2 + $0x1d0] sm:$0xff]
      %v508 = vld [vmem:[%s2 + $0x1f0] sm:$0xff]
      %509 = vmatprep.subr.mxu0 0.0
      %510 = vmatpush1.msra.mxu0 %v508
      %511 = vmatprep.subr.mxu0 0.0
      %512 = vmatpush1.msra.mxu0 %v507
      %513 = vmatprep.subr.mxu0 0.0
      %514 = vmatpush1.msra.mxu0 %v506
      %515 = vmatprep.subr.mxu0 0.0
      %516 = vmatpush1.msra.mxu0 %v505
      %517 = vmatprep.subr.mxu0 0.0
      %518 = vmatpush1.msra.mxu0 %v504
      %519 = vmatprep.subr.mxu0 0.0
      %520 = vmatpush1.msra.mxu0 %v503
      %521 = vmatprep.subr.mxu0 0.0
      %522 = vmatpush1.msra.mxu0 %v502
      %523 = vmatprep.subr.mxu0 0.0
      %524 = vmatpush1.msra.mxu0 %v501
      %525 = vmatprep.subr.mxu0 0.0
      %526 = vmatpush1.msra.mxu0 %v500
      %527 = vmatprep.subr.mxu0 0.0
      %528 = vmatpush1.msra.mxu0 %v499
      %529 = vmatprep.subr.mxu0 0.0
      %530 = vmatpush1.msra.mxu0 %v498
      %531 = vmatprep.subr.mxu0 0.0
      %532 = vmatpush1.msra.mxu0 %v497
      %533 = vmatprep.subr.mxu0 0.0
      %534 = vmatpush1.msra.mxu0 %v496
      %535 = vmatprep.subr.mxu0 0.0
      %536 = vmatpush1.msra.mxu0 %v495
      %537 = vmatprep.subr.mxu0 0.0
      %538 = vmatpush1.msra.mxu0 %v494
      %539 = vmatprep.subr.mxu0 0.0
      %540 = vmatpush1.msra.mxu0 %v493
      %541 = vmatprep.subr.mxu0 0.0
      %542 = vmatpush2.msra.mxu0 0.0
      %543 = vmatprep.subr.mxu0 0.0
      %544 = vmatpush2.msra.mxu0 0.0
      %545 = vmatprep.subr.mxu0 0.0
      %546 = vmatpush2.msra.mxu0 0.0
      %547 = vmatprep.subr.mxu0 0.0
      %548 = vmatpush2.msra.mxu0 0.0
      %549 = vmatprep.subr.mxu0 0.0
      %550 = vmatpush2.msra.mxu0 0.0
      %551 = vmatprep.subr.mxu0 0.0
      %552 = vmatpush2.msra.mxu0 0.0
      %553 = vmatprep.subr.mxu0 0.0
      %554 = vmatpush2.msra.mxu0 0.0
      %555 = vmatprep.subr.mxu0 0.0
      %556 = vmatpush2.msra.mxu0 0.0
      %557 = vmatprep.subr.mxu0 0.0
      %558 = vmatpush2.msra.mxu0 0.0
      %559 = vmatprep.subr.mxu0 0.0
      %560 = vmatpush2.msra.mxu0 0.0
      %561 = vmatprep.subr.mxu0 0.0
      %562 = vmatpush2.msra.mxu0 0.0
      %563 = vmatprep.subr.mxu0 0.0
      %564 = vmatpush2.msra.mxu0 0.0
      %565 = vmatprep.subr.mxu0 0.0
      %566 = vmatpush2.msra.mxu0 0.0
      %567 = vmatprep.subr.mxu0 0.0
      %568 = vmatpush2.msra.mxu0 0.0
      %569 = vmatprep.subr.mxu0 0.0
      %570 = vmatpush2.msra.mxu0 0.0
      %571 = vmatprep.subr.mxu0 0.0
      %572 = vmatpush2.msra.mxu0 0.0
      %573 = vmatprep.mubr.f32.mxu0 0.0
      %574 = vmatmul.mubr.f32.gmra.mxu0 %v249
      %v575 = vpop.f32.mrf.mxu0
      %v576 = vadd.f32 0.0, %v575
      %v577 = vpop.f32.mrf.mxu0
      %578 = vdwg.mxu0
      %v579 = vadd.f32 %v305, %v576
      %v580 = vtanh.pop %v579
      %v581 = vld [vmem:[%s2 + $0x18] sm:$0xff]
      %v582 = vld [vmem:[%s2 + $0x38] sm:$0xff]
      %v583 = vld [vmem:[%s2 + $0x58] sm:$0xff]
      %v584 = vld [vmem:[%s2 + $0x78] sm:$0xff]
      %v585 = vld [vmem:[%s2 + $0x98] sm:$0xff]
      %v586 = vld [vmem:[%s2 + $0xb8] sm:$0xff]
      %v587 = vld [vmem:[%s2 + $0xd8] sm:$0xff]
      %v588 = vld [vmem:[%s2 + $0xf8] sm:$0xff]
      %v589 = vld [vmem:[%s2 + $0x118] sm:$0xff]
      %v590 = vld [vmem:[%s2 + $0x138] sm:$0xff]
      %v591 = vld [vmem:[%s2 + $0x158] sm:$0xff]
      %v592 = vld [vmem:[%s2 + $0x178] sm:$0xff]
      %v593 = vld [vmem:[%s2 + $0x198] sm:$0xff]
      %v594 = vld [vmem:[%s2 + $0x1b8] sm:$0xff]
      %v595 = vld [vmem:[%s2 + $0x1d8] sm:$0xff]
      %v596 = vld [vmem:[%s2 + $0x1f8] sm:$0xff]
      %597 = vmatprep.subr.mxu0 0.0
      %598 = vmatpush1.msra.mxu0 %v596
      %599 = vmatprep.subr.mxu0 0.0
      %600 = vmatpush1.msra.mxu0 %v595
      %601 = vmatprep.subr.mxu0 0.0
      %602 = vmatpush1.msra.mxu0 %v594
      %603 = vmatprep.subr.mxu0 0.0
      %604 = vmatpush1.msra.mxu0 %v593
      %605 = vmatprep.subr.mxu0 0.0
      %606 = vmatpush1.msra.mxu0 %v592
      %607 = vmatprep.subr.mxu0 0.0
      %608 = vmatpush1.msra.mxu0 %v591
      %609 = vmatprep.subr.mxu0 0.0
      %610 = vmatpush1.msra.mxu0 %v590
      %611 = vmatprep.subr.mxu0 0.0
      %612 = vmatpush1.msra.mxu0 %v589
      %613 = vmatprep.subr.mxu0 0.0
      %614 = vmatpush1.msra.mxu0 %v588
      %615 = vmatprep.subr.mxu0 0.0
      %616 = vmatpush1.msra.mxu0 %v587
      %617 = vmatprep.subr.mxu0 0.0
      %618 = vmatpush1.msra.mxu0 %v586
      %619 = vmatprep.subr.mxu0 0.0
      %620 = vmatpush1.msra.mxu0 %v585
      %621 = vmatprep.subr.mxu0 0.0
      %622 = vmatpush1.msra.mxu0 %v584
      %623 = vmatprep.subr.mxu0 0.0
      %624 = vmatpush1.msra.mxu0 %v583
      %625 = vmatprep.subr.mxu0 0.0
      %626 = vmatpush1.msra.mxu0 %v582
      %627 = vmatprep.subr.mxu0 0.0
      %628 = vmatpush1.msra.mxu0 %v581
      %629 = vmatprep.subr.mxu0 0.0
      %630 = vmatpush2.msra.mxu0 0.0
      %631 = vmatprep.subr.mxu0 0.0
      %632 = vmatpush2.msra.mxu0 0.0
      %633 = vmatprep.subr.mxu0 0.0
      %634 = vmatpush2.msra.mxu0 0.0
      %635 = vmatprep.subr.mxu0 0.0
      %636 = vmatpush2.msra.mxu0 0.0
      %637 = vmatprep.subr.mxu0 0.0
      %638 = vmatpush2.msra.mxu0 0.0
      %639 = vmatprep.subr.mxu0 0.0
      %640 = vmatpush2.msra.mxu0 0.0
      %641 = vmatprep.subr.mxu0 0.0
      %642 = vmatpush2.msra.mxu0 0.0
      %643 = vmatprep.subr.mxu0 0.0
      %644 = vmatpush2.msra.mxu0 0.0
      %645 = vmatprep.subr.mxu0 0.0
      %646 = vmatpush2.msra.mxu0 0.0
      %647 = vmatprep.subr.mxu0 0.0
      %648 = vmatpush2.msra.mxu0 0.0
      %649 = vmatprep.subr.mxu0 0.0
      %650 = vmatpush2.msra.mxu0 0.0
      %651 = vmatprep.subr.mxu0 0.0
      %652 = vmatpush2.msra.mxu0 0.0
      %653 = vmatprep.subr.mxu0 0.0
      %654 = vmatpush2.msra.mxu0 0.0
      %655 = vmatprep.subr.mxu0 0.0
      %656 = vmatpush2.msra.mxu0 0.0
      %657 = vmatprep.subr.mxu0 0.0
      %658 = vmatpush2.msra.mxu0 0.0
      %659 = vmatprep.subr.mxu0 0.0
      %660 = vmatpush2.msra.mxu0 0.0
      %661 = vmatprep.mubr.f32.mxu0 0.0
      %662 = vmatmul.mubr.f32.gmra.mxu0 %v249
      %v663 = vpop.f32.mrf.mxu0
      %v664 = vadd.f32 0.0, %v663
      %v665 = vpop.f32.mrf.mxu0
      %666 = vdwg.mxu0
      %v667 = vadd.f32 %v306, %v664
      %v668 = vxor.u32 %v667, 2147483648
      %v669 = vmul.f32 %v668, 1.442695
      %v670 = vpow.pop %v669
      %v671 = vadd.f32 %v670, 1.0
      %v672 = vrcp.pop %v671
      %v673 = vmul.f32 1.0, %v672
      %v674 = vmul.f32 %v492, %v250
      %v675 = vmul.f32 %v399, %v580
      %v676 = vadd.f32 %v674, %v675
      %v677 = vtanh.pop %v676
      %v678 = vmul.f32 %v673, %v677
      %s679 = scalar_lea.vmem %s239, 2
      %v680 = vld [vmem:[%s679] sm:$0x3]
      %682 = vset.pattern.permute.xlu0 0
      %683 = vperm.xlu0 %682, %v680
      %v684 = vpop.permute.xlu0 %683
      %v686 = vmul.f32 %v684, %v261
      %v687 = vmul.f32 %v684, %v265
      %v688 = vmul.f32 %v684, %v269
      %v689 = vmul.f32 %v684, %v273
      %v690 = vadd.f32 %v286, %v686
      %v691 = vadd.f32 %v290, %v687
      %v692 = vadd.f32 %v294, %v688
      %v693 = vadd.f32 %v298, %v689
      %694 = vmatprep.subr.mxu0 0.0
      %695 = vmatpush1.msra.mxu0 %v322
      %696 = vmatprep.subr.mxu0 0.0
      %697 = vmatpush1.msra.mxu0 %v321
      %698 = vmatprep.subr.mxu0 0.0
      %699 = vmatpush1.msra.mxu0 %v320
      %700 = vmatprep.subr.mxu0 0.0
      %701 = vmatpush1.msra.mxu0 %v319
      %702 = vmatprep.subr.mxu0 0.0
      %703 = vmatpush1.msra.mxu0 %v318
      %704 = vmatprep.subr.mxu0 0.0
      %705 = vmatpush1.msra.mxu0 %v317
      %706 = vmatprep.subr.mxu0 0.0
      %707 = vmatpush1.msra.mxu0 %v316
      %708 = vmatprep.subr.mxu0 0.0
      %709 = vmatpush1.msra.mxu0 %v315
      %710 = vmatprep.subr.mxu0 0.0
      %711 = vmatpush1.msra.mxu0 %v314
      %712 = vmatprep.subr.mxu0 0.0
      %713 = vmatpush1.msra.mxu0 %v313
      %714 = vmatprep.subr.mxu0 0.0
      %715 = vmatpush1.msra.mxu0 %v312
      %716 = vmatprep.subr.mxu0 0.0
      %717 = vmatpush1.msra.mxu0 %v311
      %718 = vmatprep.subr.mxu0 0.0
      %719 = vmatpush1.msra.mxu0 %v310
      %720 = vmatprep.subr.mxu0 0.0
      %721 = vmatpush1.msra.mxu0 %v309
      %722 = vmatprep.subr.mxu0 0.0
      %723 = vmatpush1.msra.mxu0 %v308
      %724 = vmatprep.subr.mxu0 0.0
      %725 = vmatpush1.msra.mxu0 %v307
      %726 = vmatprep.subr.mxu0 0.0
      %727 = vmatpush2.msra.mxu0 0.0
      %728 = vmatprep.subr.mxu0 0.0
      %729 = vmatpush2.msra.mxu0 0.0
      %730 = vmatprep.subr.mxu0 0.0
      %731 = vmatpush2.msra.mxu0 0.0
      %732 = vmatprep.subr.mxu0 0.0
      %733 = vmatpush2.msra.mxu0 0.0
      %734 = vmatprep.subr.mxu0 0.0
      %735 = vmatpush2.msra.mxu0 0.0
      %736 = vmatprep.subr.mxu0 0.0
      %737 = vmatpush2.msra.mxu0 0.0
      %738 = vmatprep.subr.mxu0 0.0
      %739 = vmatpush2.msra.mxu0 0.0
      %740 = vmatprep.subr.mxu0 0.0
      %741 = vmatpush2.msra.mxu0 0.0
      %742 = vmatprep.subr.mxu0 0.0
      %743 = vmatpush2.msra.mxu0 0.0
      %744 = vmatprep.subr.mxu0 0.0
      %745 = vmatpush2.msra.mxu0 0.0
      %746 = vmatprep.subr.mxu0 0.0
      %747 = vmatpush2.msra.mxu0 0.0
      %748 = vmatprep.subr.mxu0 0.0
      %749 = vmatpush2.msra.mxu0 0.0
      %750 = vmatprep.subr.mxu0 0.0
      %751 = vmatpush2.msra.mxu0 0.0
      %752 = vmatprep.subr.mxu0 0.0
      %753 = vmatpush2.msra.mxu0 0.0
      %754 = vmatprep.subr.mxu0 0.0
      %755 = vmatpush2.msra.mxu0 0.0
      %756 = vmatprep.subr.mxu0 0.0
      %757 = vmatpush2.msra.mxu0 0.0
      %758 = vmatprep.mubr.f32.mxu0 0.0
      %759 = vmatmul.mubr.f32.gmra.mxu0 %v678
      %v760 = vpop.f32.mrf.mxu0
      %v761 = vadd.f32 0.0, %v760
      %v762 = vpop.f32.mrf.mxu0
      %763 = vdwg.mxu0
      %v764 = vadd.f32 %v690, %v761
      %v765 = vxor.u32 %v764, 2147483648
      %v766 = vmul.f32 %v765, 1.442695
      %v767 = vpow.pop %v766
      %v768 = vadd.f32 %v767, 1.0
      %v769 = vrcp.pop %v768
      %v770 = vmul.f32 1.0, %v769
      %771 = vmatprep.subr.mxu0 0.0
      %772 = vmatpush1.msra.mxu0 %v415
      %773 = vmatprep.subr.mxu0 0.0
      %774 = vmatpush1.msra.mxu0 %v414
      %775 = vmatprep.subr.mxu0 0.0
      %776 = vmatpush1.msra.mxu0 %v413
      %777 = vmatprep.subr.mxu0 0.0
      %778 = vmatpush1.msra.mxu0 %v412
      %779 = vmatprep.subr.mxu0 0.0
      %780 = vmatpush1.msra.mxu0 %v411
      %781 = vmatprep.subr.mxu0 0.0
      %782 = vmatpush1.msra.mxu0 %v410
      %783 = vmatprep.subr.mxu0 0.0
      %784 = vmatpush1.msra.mxu0 %v409
      %785 = vmatprep.subr.mxu0 0.0
      %786 = vmatpush1.msra.mxu0 %v408
      %787 = vmatprep.subr.mxu0 0.0
      %788 = vmatpush1.msra.mxu0 %v407
      %789 = vmatprep.subr.mxu0 0.0
      %790 = vmatpush1.msra.mxu0 %v406
      %791 = vmatprep.subr.mxu0 0.0
      %792 = vmatpush1.msra.mxu0 %v405
      %793 = vmatprep.subr.mxu0 0.0
      %794 = vmatpush1.msra.mxu0 %v404
      %795 = vmatprep.subr.mxu0 0.0
      %796 = vmatpush1.msra.mxu0 %v403
      %797 = vmatprep.subr.mxu0 0.0
      %798 = vmatpush1.msra.mxu0 %v402
      %799 = vmatprep.subr.mxu0 0.0
      %800 = vmatpush1.msra.mxu0 %v401
      %801 = vmatprep.subr.mxu0 0.0
      %802 = vmatpush1.msra.mxu0 %v400
      %803 = vmatprep.subr.mxu0 0.0
      %804 = vmatpush2.msra.mxu0 0.0
      %805 = vmatprep.subr.mxu0 0.0
      %806 = vmatpush2.msra.mxu0 0.0
      %807 = vmatprep.subr.mxu0 0.0
      %808 = vmatpush2.msra.mxu0 0.0
      %809 = vmatprep.subr.mxu0 0.0
      %810 = vmatpush2.msra.mxu0 0.0
      %811 = vmatprep.subr.mxu0 0.0
      %812 = vmatpush2.msra.mxu0 0.0
      %813 = vmatprep.subr.mxu0 0.0
      %814 = vmatpush2.msra.mxu0 0.0
      %815 = vmatprep.subr.mxu0 0.0
      %816 = vmatpush2.msra.mxu0 0.0
      %817 = vmatprep.subr.mxu0 0.0
      %818 = vmatpush2.msra.mxu0 0.0
      %819 = vmatprep.subr.mxu0 0.0
      %820 = vmatpush2.msra.mxu0 0.0
      %821 = vmatprep.subr.mxu0 0.0
      %822 = vmatpush2.msra.mxu0 0.0
      %823 = vmatprep.subr.mxu0 0.0
      %824 = vmatpush2.msra.mxu0 0.0
      %825 = vmatprep.subr.mxu0 0.0
      %826 = vmatpush2.msra.mxu0 0.0
      %827 = vmatprep.subr.mxu0 0.0
      %828 = vmatpush2.msra.mxu0 0.0
      %829 = vmatprep.subr.mxu0 0.0
      %830 = vmatpush2.msra.mxu0 0.0
      %831 = vmatprep.subr.mxu0 0.0
      %832 = vmatpush2.msra.mxu0 0.0
      %833 = vmatprep.subr.mxu0 0.0
      %834 = vmatpush2.msra.mxu0 0.0
      %835 = vmatprep.mubr.f32.mxu0 0.0
      %836 = vmatmul.mubr.f32.gmra.mxu0 %v678
      %v837 = vpop.f32.mrf.mxu0
      %v838 = vadd.f32 0.0, %v837
      %v839 = vpop.f32.mrf.mxu0
      %840 = vdwg.mxu0
      %v841 = vadd.f32 %v691, %v838
      %v842 = vxor.u32 %v841, 2147483648
      %v843 = vmul.f32 %v842, 1.442695
      %v844 = vpow.pop %v843
      %v845 = vadd.f32 %v844, 1.0
      %v846 = vrcp.pop %v845
      %v847 = vmul.f32 1.0, %v846
      %848 = vmatprep.subr.mxu0 0.0
      %849 = vmatpush1.msra.mxu0 %v508
      %850 = vmatprep.subr.mxu0 0.0
      %851 = vmatpush1.msra.mxu0 %v507
      %852 = vmatprep.subr.mxu0 0.0
      %853 = vmatpush1.msra.mxu0 %v506
      %854 = vmatprep.subr.mxu0 0.0
      %855 = vmatpush1.msra.mxu0 %v505
      %856 = vmatprep.subr.mxu0 0.0
      %857 = vmatpush1.msra.mxu0 %v504
      %858 = vmatprep.subr.mxu0 0.0
      %859 = vmatpush1.msra.mxu0 %v503
      %860 = vmatprep.subr.mxu0 0.0
      %861 = vmatpush1.msra.mxu0 %v502
      %862 = vmatprep.subr.mxu0 0.0
      %863 = vmatpush1.msra.mxu0 %v501
      %864 = vmatprep.subr.mxu0 0.0
      %865 = vmatpush1.msra.mxu0 %v500
      %866 = vmatprep.subr.mxu0 0.0
      %867 = vmatpush1.msra.mxu0 %v499
      %868 = vmatprep.subr.mxu0 0.0
      %869 = vmatpush1.msra.mxu0 %v498
      %870 = vmatprep.subr.mxu0 0.0
      %871 = vmatpush1.msra.mxu0 %v497
      %872 = vmatprep.subr.mxu0 0.0
      %873 = vmatpush1.msra.mxu0 %v496
      %874 = vmatprep.subr.mxu0 0.0
      %875 = vmatpush1.msra.mxu0 %v495
      %876 = vmatprep.subr.mxu0 0.0
      %877 = vmatpush1.msra.mxu0 %v494
      %878 = vmatprep.subr.mxu0 0.0
      %879 = vmatpush1.msra.mxu0 %v493
      %880 = vmatprep.subr.mxu0 0.0
      %881 = vmatpush2.msra.mxu0 0.0
      %882 = vmatprep.subr.mxu0 0.0
      %883 = vmatpush2.msra.mxu0 0.0
      %884 = vmatprep.subr.mxu0 0.0
      %885 = vmatpush2.msra.mxu0 0.0
      %886 = vmatprep.subr.mxu0 0.0
      %887 = vmatpush2.msra.mxu0 0.0
      %888 = vmatprep.subr.mxu0 0.0
      %889 = vmatpush2.msra.mxu0 0.0
      %890 = vmatprep.subr.mxu0 0.0
      %891 = vmatpush2.msra.mxu0 0.0
      %892 = vmatprep.subr.mxu0 0.0
      %893 = vmatpush2.msra.mxu0 0.0
      %894 = vmatprep.subr.mxu0 0.0
      %895 = vmatpush2.msra.mxu0 0.0
      %896 = vmatprep.subr.mxu0 0.0
      %897 = vmatpush2.msra.mxu0 0.0
      %898 = vmatprep.subr.mxu0 0.0
      %899 = vmatpush2.msra.mxu0 0.0
      %900 = vmatprep.subr.mxu0 0.0
      %901 = vmatpush2.msra.mxu0 0.0
      %902 = vmatprep.subr.mxu0 0.0
      %903 = vmatpush2.msra.mxu0 0.0
      %904 = vmatprep.subr.mxu0 0.0
      %905 = vmatpush2.msra.mxu0 0.0
      %906 = vmatprep.subr.mxu0 0.0
      %907 = vmatpush2.msra.mxu0 0.0
      %908 = vmatprep.subr.mxu0 0.0
      %909 = vmatpush2.msra.mxu0 0.0
      %910 = vmatprep.subr.mxu0 0.0
      %911 = vmatpush2.msra.mxu0 0.0
      %912 = vmatprep.mubr.f32.mxu0 0.0
      %913 = vmatmul.mubr.f32.gmra.mxu0 %v678
      %v914 = vpop.f32.mrf.mxu0
      %v915 = vadd.f32 0.0, %v914
      %v916 = vpop.f32.mrf.mxu0
      %917 = vdwg.mxu0
      %v918 = vadd.f32 %v692, %v915
      %v919 = vtanh.pop %v918
      %920 = vmatprep.subr.mxu0 0.0
      %921 = vmatpush1.msra.mxu0 %v596
      %922 = vmatprep.subr.mxu0 0.0
      %923 = vmatpush1.msra.mxu0 %v595
      %924 = vmatprep.subr.mxu0 0.0
      %925 = vmatpush1.msra.mxu0 %v594
      %926 = vmatprep.subr.mxu0 0.0
      %927 = vmatpush1.msra.mxu0 %v593
      %928 = vmatprep.subr.mxu0 0.0
      %929 = vmatpush1.msra.mxu0 %v592
      %930 = vmatprep.subr.mxu0 0.0
      %931 = vmatpush1.msra.mxu0 %v591
      %932 = vmatprep.subr.mxu0 0.0
      %933 = vmatpush1.msra.mxu0 %v590
      %934 = vmatprep.subr.mxu0 0.0
      %935 = vmatpush1.msra.mxu0 %v589
      %936 = vmatprep.subr.mxu0 0.0
      %937 = vmatpush1.msra.mxu0 %v588
      %938 = vmatprep.subr.mxu0 0.0
      %939 = vmatpush1.msra.mxu0 %v587
      %940 = vmatprep.subr.mxu0 0.0
      %941 = vmatpush1.msra.mxu0 %v586
      %942 = vmatprep.subr.mxu0 0.0
      %943 = vmatpush1.msra.mxu0 %v585
      %944 = vmatprep.subr.mxu0 0.0
      %945 = vmatpush1.msra.mxu0 %v584
      %946 = vmatprep.subr.mxu0 0.0
      %947 = vmatpush1.msra.mxu0 %v583
      %948 = vmatprep.subr.mxu0 0.0
      %949 = vmatpush1.msra.mxu0 %v582
      %950 = vmatprep.subr.mxu0 0.0
      %951 = vmatpush1.msra.mxu0 %v581
      %952 = vmatprep.subr.mxu0 0.0
      %953 = vmatpush2.msra.mxu0 0.0
      %954 = vmatprep.subr.mxu0 0.0
      %955 = vmatpush2.msra.mxu0 0.0
      %956 = vmatprep.subr.mxu0 0.0
      %957 = vmatpush2.msra.mxu0 0.0
      %958 = vmatprep.subr.mxu0 0.0
      %959 = vmatpush2.msra.mxu0 0.0
      %960 = vmatprep.subr.mxu0 0.0
      %961 = vmatpush2.msra.mxu0 0.0
      %962 = vmatprep.subr.mxu0 0.0
      %963 = vmatpush2.msra.mxu0 0.0
      %964 = vmatprep.subr.mxu0 0.0
      %965 = vmatpush2.msra.mxu0 0.0
      %966 = vmatprep.subr.mxu0 0.0
      %967 = vmatpush2.msra.mxu0 0.0
      %968 = vmatprep.subr.mxu0 0.0
      %969 = vmatpush2.msra.mxu0 0.0
      %970 = vmatprep.subr.mxu0 0.0
      %971 = vmatpush2.msra.mxu0 0.0
      %972 = vmatprep.subr.mxu0 0.0
      %973 = vmatpush2.msra.mxu0 0.0
      %974 = vmatprep.subr.mxu0 0.0
      %975 = vmatpush2.msra.mxu0 0.0
      %976 = vmatprep.subr.mxu0 0.0
      %977 = vmatpush2.msra.mxu0 0.0
      %978 = vmatprep.subr.mxu0 0.0
      %979 = vmatpush2.msra.mxu0 0.0
      %980 = vmatprep.subr.mxu0 0.0
      %981 = vmatpush2.msra.mxu0 0.0
      %982 = vmatprep.subr.mxu0 0.0
      %983 = vmatpush2.msra.mxu0 0.0
      %984 = vmatprep.mubr.f32.mxu0 0.0
      %985 = vmatmul.mubr.f32.gmra.mxu0 %v678
      %v986 = vpop.f32.mrf.mxu0
      %v987 = vadd.f32 0.0, %v986
      %v988 = vpop.f32.mrf.mxu0
      %989 = vdwg.mxu0
      %v990 = vadd.f32 %v693, %v987
      %v991 = vxor.u32 %v990, 2147483648
      %v992 = vmul.f32 %v991, 1.442695
      %v993 = vpow.pop %v992
      %v994 = vadd.f32 %v993, 1.0
      %v995 = vrcp.pop %v994
      %v996 = vmul.f32 1.0, %v995
      %v997 = vmul.f32 %v847, %v676
      %v998 = vmul.f32 %v770, %v919
      %v999 = vadd.f32 %v997, %v998
      %v1000 = vtanh.pop %v999
      %v1001 = vmul.f32 %v996, %v1000
      %s1002 = scalar_lea.vmem %s239, 4
      %v1003 = vld [vmem:[%s1002] sm:$0x3]
      %1005 = vset.pattern.permute.xlu0 0
      %1006 = vperm.xlu0 %1005, %v1003
      %v1007 = vpop.permute.xlu0 %1006
      %v1009 = vmul.f32 %v1007, %v261
      %v1010 = vmul.f32 %v1007, %v265
      %v1011 = vmul.f32 %v1007, %v269
      %v1012 = vmul.f32 %v1007, %v273
      %v1013 = vadd.f32 %v286, %v1009
      %v1014 = vadd.f32 %v290, %v1010
      %v1015 = vadd.f32 %v294, %v1011
      %v1016 = vadd.f32 %v298, %v1012
      %1017 = vmatprep.subr.mxu0 0.0
      %1018 = vmatpush1.msra.mxu0 %v322
      %1019 = vmatprep.subr.mxu0 0.0
      %1020 = vmatpush1.msra.mxu0 %v321
      %1021 = vmatprep.subr.mxu0 0.0
      %1022 = vmatpush1.msra.mxu0 %v320
      %1023 = vmatprep.subr.mxu0 0.0
      %1024 = vmatpush1.msra.mxu0 %v319
      %1025 = vmatprep.subr.mxu0 0.0
      %1026 = vmatpush1.msra.mxu0 %v318
      %1027 = vmatprep.subr.mxu0 0.0
      %1028 = vmatpush1.msra.mxu0 %v317
      %1029 = vmatprep.subr.mxu0 0.0
      %1030 = vmatpush1.msra.mxu0 %v316
      %1031 = vmatprep.subr.mxu0 0.0
      %1032 = vmatpush1.msra.mxu0 %v315
      %1033 = vmatprep.subr.mxu0 0.0
      %1034 = vmatpush1.msra.mxu0 %v314
      %1035 = vmatprep.subr.mxu0 0.0
      %1036 = vmatpush1.msra.mxu0 %v313
      %1037 = vmatprep.subr.mxu0 0.0
      %1038 = vmatpush1.msra.mxu0 %v312
      %1039 = vmatprep.subr.mxu0 0.0
      %1040 = vmatpush1.msra.mxu0 %v311
      %1041 = vmatprep.subr.mxu0 0.0
      %1042 = vmatpush1.msra.mxu0 %v310
      %1043 = vmatprep.subr.mxu0 0.0
      %1044 = vmatpush1.msra.mxu0 %v309
      %1045 = vmatprep.subr.mxu0 0.0
      %1046 = vmatpush1.msra.mxu0 %v308
      %1047 = vmatprep.subr.mxu0 0.0
      %1048 = vmatpush1.msra.mxu0 %v307
      %1049 = vmatprep.subr.mxu0 0.0
      %1050 = vmatpush2.msra.mxu0 0.0
      %1051 = vmatprep.subr.mxu0 0.0
      %1052 = vmatpush2.msra.mxu0 0.0
      %1053 = vmatprep.subr.mxu0 0.0
      %1054 = vmatpush2.msra.mxu0 0.0
      %1055 = vmatprep.subr.mxu0 0.0
      %1056 = vmatpush2.msra.mxu0 0.0
      %1057 = vmatprep.subr.mxu0 0.0
      %1058 = vmatpush2.msra.mxu0 0.0
      %1059 = vmatprep.subr.mxu0 0.0
      %1060 = vmatpush2.msra.mxu0 0.0
      %1061 = vmatprep.subr.mxu0 0.0
      %1062 = vmatpush2.msra.mxu0 0.0
      %1063 = vmatprep.subr.mxu0 0.0
      %1064 = vmatpush2.msra.mxu0 0.0
      %1065 = vmatprep.subr.mxu0 0.0
      %1066 = vmatpush2.msra.mxu0 0.0
      %1067 = vmatprep.subr.mxu0 0.0
      %1068 = vmatpush2.msra.mxu0 0.0
      %1069 = vmatprep.subr.mxu0 0.0
      %1070 = vmatpush2.msra.mxu0 0.0
      %1071 = vmatprep.subr.mxu0 0.0
      %1072 = vmatpush2.msra.mxu0 0.0
      %1073 = vmatprep.subr.mxu0 0.0
      %1074 = vmatpush2.msra.mxu0 0.0
      %1075 = vmatprep.subr.mxu0 0.0
      %1076 = vmatpush2.msra.mxu0 0.0
      %1077 = vmatprep.subr.mxu0 0.0
      %1078 = vmatpush2.msra.mxu0 0.0
      %1079 = vmatprep.subr.mxu0 0.0
      %1080 = vmatpush2.msra.mxu0 0.0
      %1081 = vmatprep.mubr.f32.mxu0 0.0
      %1082 = vmatmul.mubr.f32.gmra.mxu0 %v1001
      %v1083 = vpop.f32.mrf.mxu0
      %v1084 = vadd.f32 0.0, %v1083
      %v1085 = vpop.f32.mrf.mxu0
      %1086 = vdwg.mxu0
      %v1087 = vadd.f32 %v1013, %v1084
      %v1088 = vxor.u32 %v1087, 2147483648
      %v1089 = vmul.f32 %v1088, 1.442695
      %v1090 = vpow.pop %v1089
      %v1091 = vadd.f32 %v1090, 1.0
      %v1092 = vrcp.pop %v1091
      %v1093 = vmul.f32 1.0, %v1092
      %1094 = vmatprep.subr.mxu0 0.0
      %1095 = vmatpush1.msra.mxu0 %v415
      %1096 = vmatprep.subr.mxu0 0.0
      %1097 = vmatpush1.msra.mxu0 %v414
      %1098 = vmatprep.subr.mxu0 0.0
      %1099 = vmatpush1.msra.mxu0 %v413
      %1100 = vmatprep.subr.mxu0 0.0
      %1101 = vmatpush1.msra.mxu0 %v412
      %1102 = vmatprep.subr.mxu0 0.0
      %1103 = vmatpush1.msra.mxu0 %v411
      %1104 = vmatprep.subr.mxu0 0.0
      %1105 = vmatpush1.msra.mxu0 %v410
      %1106 = vmatprep.subr.mxu0 0.0
      %1107 = vmatpush1.msra.mxu0 %v409
      %1108 = vmatprep.subr.mxu0 0.0
      %1109 = vmatpush1.msra.mxu0 %v408
      %1110 = vmatprep.subr.mxu0 0.0
      %1111 = vmatpush1.msra.mxu0 %v407
      %1112 = vmatprep.subr.mxu0 0.0
      %1113 = vmatpush1.msra.mxu0 %v406
      %1114 = vmatprep.subr.mxu0 0.0
      %1115 = vmatpush1.msra.mxu0 %v405
      %1116 = vmatprep.subr.mxu0 0.0
      %1117 = vmatpush1.msra.mxu0 %v404
      %1118 = vmatprep.subr.mxu0 0.0
      %1119 = vmatpush1.msra.mxu0 %v403
      %1120 = vmatprep.subr.mxu0 0.0
      %1121 = vmatpush1.msra.mxu0 %v402
      %1122 = vmatprep.subr.mxu0 0.0
      %1123 = vmatpush1.msra.mxu0 %v401
      %1124 = vmatprep.subr.mxu0 0.0
      %1125 = vmatpush1.msra.mxu0 %v400
      %1126 = vmatprep.subr.mxu0 0.0
      %1127 = vmatpush2.msra.mxu0 0.0
      %1128 = vmatprep.subr.mxu0 0.0
      %1129 = vmatpush2.msra.mxu0 0.0
      %1130 = vmatprep.subr.mxu0 0.0
      %1131 = vmatpush2.msra.mxu0 0.0
      %1132 = vmatprep.subr.mxu0 0.0
      %1133 = vmatpush2.msra.mxu0 0.0
      %1134 = vmatprep.subr.mxu0 0.0
      %1135 = vmatpush2.msra.mxu0 0.0
      %1136 = vmatprep.subr.mxu0 0.0
      %1137 = vmatpush2.msra.mxu0 0.0
      %1138 = vmatprep.subr.mxu0 0.0
      %1139 = vmatpush2.msra.mxu0 0.0
      %1140 = vmatprep.subr.mxu0 0.0
      %1141 = vmatpush2.msra.mxu0 0.0
      %1142 = vmatprep.subr.mxu0 0.0
      %1143 = vmatpush2.msra.mxu0 0.0
      %1144 = vmatprep.subr.mxu0 0.0
      %1145 = vmatpush2.msra.mxu0 0.0
      %1146 = vmatprep.subr.mxu0 0.0
      %1147 = vmatpush2.msra.mxu0 0.0
      %1148 = vmatprep.subr.mxu0 0.0
      %1149 = vmatpush2.msra.mxu0 0.0
      %1150 = vmatprep.subr.mxu0 0.0
      %1151 = vmatpush2.msra.mxu0 0.0
      %1152 = vmatprep.subr.mxu0 0.0
      %1153 = vmatpush2.msra.mxu0 0.0
      %1154 = vmatprep.subr.mxu0 0.0
      %1155 = vmatpush2.msra.mxu0 0.0
      %1156 = vmatprep.subr.mxu0 0.0
      %1157 = vmatpush2.msra.mxu0 0.0
      %1158 = vmatprep.mubr.f32.mxu0 0.0
      %1159 = vmatmul.mubr.f32.gmra.mxu0 %v1001
      %v1160 = vpop.f32.mrf.mxu0
      %v1161 = vadd.f32 0.0, %v1160
      %v1162 = vpop.f32.mrf.mxu0
      %1163 = vdwg.mxu0
      %v1164 = vadd.f32 %v1014, %v1161
      %v1165 = vxor.u32 %v1164, 2147483648
      %v1166 = vmul.f32 %v1165, 1.442695
      %v1167 = vpow.pop %v1166
      %v1168 = vadd.f32 %v1167, 1.0
      %v1169 = vrcp.pop %v1168
      %v1170 = vmul.f32 1.0, %v1169
      %1171 = vmatprep.subr.mxu0 0.0
      %1172 = vmatpush1.msra.mxu0 %v508
      %1173 = vmatprep.subr.mxu0 0.0
      %1174 = vmatpush1.msra.mxu0 %v507
      %1175 = vmatprep.subr.mxu0 0.0
      %1176 = vmatpush1.msra.mxu0 %v506
      %1177 = vmatprep.subr.mxu0 0.0
      %1178 = vmatpush1.msra.mxu0 %v505
      %1179 = vmatprep.subr.mxu0 0.0
      %1180 = vmatpush1.msra.mxu0 %v504
      %1181 = vmatprep.subr.mxu0 0.0
      %1182 = vmatpush1.msra.mxu0 %v503
      %1183 = vmatprep.subr.mxu0 0.0
      %1184 = vmatpush1.msra.mxu0 %v502
      %1185 = vmatprep.subr.mxu0 0.0
      %1186 = vmatpush1.msra.mxu0 %v501
      %1187 = vmatprep.subr.mxu0 0.0
      %1188 = vmatpush1.msra.mxu0 %v500
      %1189 = vmatprep.subr.mxu0 0.0
      %1190 = vmatpush1.msra.mxu0 %v499
      %1191 = vmatprep.subr.mxu0 0.0
      %1192 = vmatpush1.msra.mxu0 %v498
      %1193 = vmatprep.subr.mxu0 0.0
      %1194 = vmatpush1.msra.mxu0 %v497
      %1195 = vmatprep.subr.mxu0 0.0
      %1196 = vmatpush1.msra.mxu0 %v496
      %1197 = vmatprep.subr.mxu0 0.0
      %1198 = vmatpush1.msra.mxu0 %v495
      %1199 = vmatprep.subr.mxu0 0.0
      %1200 = vmatpush1.msra.mxu0 %v494
      %1201 = vmatprep.subr.mxu0 0.0
      %1202 = vmatpush1.msra.mxu0 %v493
      %1203 = vmatprep.subr.mxu0 0.0
      %1204 = vmatpush2.msra.mxu0 0.0
      %1205 = vmatprep.subr.mxu0 0.0
      %1206 = vmatpush2.msra.mxu0 0.0
      %1207 = vmatprep.subr.mxu0 0.0
      %1208 = vmatpush2.msra.mxu0 0.0
      %1209 = vmatprep.subr.mxu0 0.0
      %1210 = vmatpush2.msra.mxu0 0.0
      %1211 = vmatprep.subr.mxu0 0.0
      %1212 = vmatpush2.msra.mxu0 0.0
      %1213 = vmatprep.subr.mxu0 0.0
      %1214 = vmatpush2.msra.mxu0 0.0
      %1215 = vmatprep.subr.mxu0 0.0
      %1216 = vmatpush2.msra.mxu0 0.0
      %1217 = vmatprep.subr.mxu0 0.0
      %1218 = vmatpush2.msra.mxu0 0.0
      %1219 = vmatprep.subr.mxu0 0.0
      %1220 = vmatpush2.msra.mxu0 0.0
      %1221 = vmatprep.subr.mxu0 0.0
      %1222 = vmatpush2.msra.mxu0 0.0
      %1223 = vmatprep.subr.mxu0 0.0
      %1224 = vmatpush2.msra.mxu0 0.0
      %1225 = vmatprep.subr.mxu0 0.0
      %1226 = vmatpush2.msra.mxu0 0.0
      %1227 = vmatprep.subr.mxu0 0.0
      %1228 = vmatpush2.msra.mxu0 0.0
      %1229 = vmatprep.subr.mxu0 0.0
      %1230 = vmatpush2.msra.mxu0 0.0
      %1231 = vmatprep.subr.mxu0 0.0
      %1232 = vmatpush2.msra.mxu0 0.0
      %1233 = vmatprep.subr.mxu0 0.0
      %1234 = vmatpush2.msra.mxu0 0.0
      %1235 = vmatprep.mubr.f32.mxu0 0.0
      %1236 = vmatmul.mubr.f32.gmra.mxu0 %v1001
      %v1237 = vpop.f32.mrf.mxu0
      %v1238 = vadd.f32 0.0, %v1237
      %v1239 = vpop.f32.mrf.mxu0
      %1240 = vdwg.mxu0
      %v1241 = vadd.f32 %v1015, %v1238
      %v1242 = vtanh.pop %v1241
      %1243 = vmatprep.subr.mxu0 0.0
      %1244 = vmatpush1.msra.mxu0 %v596
      %1245 = vmatprep.subr.mxu0 0.0
      %1246 = vmatpush1.msra.mxu0 %v595
      %1247 = vmatprep.subr.mxu0 0.0
      %1248 = vmatpush1.msra.mxu0 %v594
      %1249 = vmatprep.subr.mxu0 0.0
      %1250 = vmatpush1.msra.mxu0 %v593
      %1251 = vmatprep.subr.mxu0 0.0
      %1252 = vmatpush1.msra.mxu0 %v592
      %1253 = vmatprep.subr.mxu0 0.0
      %1254 = vmatpush1.msra.mxu0 %v591
      %1255 = vmatprep.subr.mxu0 0.0
      %1256 = vmatpush1.msra.mxu0 %v590
      %1257 = vmatprep.subr.mxu0 0.0
      %1258 = vmatpush1.msra.mxu0 %v589
      %1259 = vmatprep.subr.mxu0 0.0
      %1260 = vmatpush1.msra.mxu0 %v588
      %1261 = vmatprep.subr.mxu0 0.0
      %1262 = vmatpush1.msra.mxu0 %v587
      %1263 = vmatprep.subr.mxu0 0.0
      %1264 = vmatpush1.msra.mxu0 %v586
      %1265 = vmatprep.subr.mxu0 0.0
      %1266 = vmatpush1.msra.mxu0 %v585
      %1267 = vmatprep.subr.mxu0 0.0
      %1268 = vmatpush1.msra.mxu0 %v584
      %1269 = vmatprep.subr.mxu0 0.0
      %1270 = vmatpush1.msra.mxu0 %v583
      %1271 = vmatprep.subr.mxu0 0.0
      %1272 = vmatpush1.msra.mxu0 %v582
      %1273 = vmatprep.subr.mxu0 0.0
      %1274 = vmatpush1.msra.mxu0 %v581
      %1275 = vmatprep.subr.mxu0 0.0
      %1276 = vmatpush2.msra.mxu0 0.0
      %1277 = vmatprep.subr.mxu0 0.0
      %1278 = vmatpush2.msra.mxu0 0.0
      %1279 = vmatprep.subr.mxu0 0.0
      %1280 = vmatpush2.msra.mxu0 0.0
      %1281 = vmatprep.subr.mxu0 0.0
      %1282 = vmatpush2.msra.mxu0 0.0
      %1283 = vmatprep.subr.mxu0 0.0
      %1284 = vmatpush2.msra.mxu0 0.0
      %1285 = vmatprep.subr.mxu0 0.0
      %1286 = vmatpush2.msra.mxu0 0.0
      %1287 = vmatprep.subr.mxu0 0.0
      %1288 = vmatpush2.msra.mxu0 0.0
      %1289 = vmatprep.subr.mxu0 0.0
      %1290 = vmatpush2.msra.mxu0 0.0
      %1291 = vmatprep.subr.mxu0 0.0
      %1292 = vmatpush2.msra.mxu0 0.0
      %1293 = vmatprep.subr.mxu0 0.0
      %1294 = vmatpush2.msra.mxu0 0.0
      %1295 = vmatprep.subr.mxu0 0.0
      %1296 = vmatpush2.msra.mxu0 0.0
      %1297 = vmatprep.subr.mxu0 0.0
      %1298 = vmatpush2.msra.mxu0 0.0
      %1299 = vmatprep.subr.mxu0 0.0
      %1300 = vmatpush2.msra.mxu0 0.0
      %1301 = vmatprep.subr.mxu0 0.0
      %1302 = vmatpush2.msra.mxu0 0.0
      %1303 = vmatprep.subr.mxu0 0.0
      %1304 = vmatpush2.msra.mxu0 0.0
      %1305 = vmatprep.subr.mxu0 0.0
      %1306 = vmatpush2.msra.mxu0 0.0
      %1307 = vmatprep.mubr.f32.mxu0 0.0
      %1308 = vmatmul.mubr.f32.gmra.mxu0 %v1001
      %v1309 = vpop.f32.mrf.mxu0
      %v1310 = vadd.f32 0.0, %v1309
      %v1311 = vpop.f32.mrf.mxu0
      %1312 = vdwg.mxu0
      %v1313 = vadd.f32 %v1016, %v1310
      %v1314 = vxor.u32 %v1313, 2147483648
      %v1315 = vmul.f32 %v1314, 1.442695
      %v1316 = vpow.pop %v1315
      %v1317 = vadd.f32 %v1316, 1.0
      %v1318 = vrcp.pop %v1317
      %v1319 = vmul.f32 1.0, %v1318
      %v1320 = vmul.f32 %v1170, %v999
      %v1321 = vmul.f32 %v1093, %v1242
      %v1322 = vadd.f32 %v1320, %v1321
      %v1323 = vtanh.pop %v1322
      %v1324 = vmul.f32 %v1319, %v1323
      %s1325 = scalar_lea.vmem %s239, 6
      %v1326 = vld [vmem:[%s1325] sm:$0x3]
      %1328 = vset.pattern.permute.xlu0 0
      %1329 = vperm.xlu0 %1328, %v1326
      %v1330 = vpop.permute.xlu0 %1329
      %v1332 = vmul.f32 %v1330, %v261
      %v1333 = vmul.f32 %v1330, %v265
      %v1334 = vmul.f32 %v1330, %v269
      %v1335 = vmul.f32 %v1330, %v273
      %v1336 = vadd.f32 %v286, %v1332
      %v1337 = vadd.f32 %v290, %v1333
      %v1338 = vadd.f32 %v294, %v1334
      %v1339 = vadd.f32 %v298, %v1335
      %1340 = vmatprep.subr.mxu0 0.0
      %1341 = vmatpush1.msra.mxu0 %v322
      %1342 = vmatprep.subr.mxu0 0.0
      %1343 = vmatpush1.msra.mxu0 %v321
      %1344 = vmatprep.subr.mxu0 0.0
      %1345 = vmatpush1.msra.mxu0 %v320
      %1346 = vmatprep.subr.mxu0 0.0
      %1347 = vmatpush1.msra.mxu0 %v319
      %1348 = vmatprep.subr.mxu0 0.0
      %1349 = vmatpush1.msra.mxu0 %v318
      %1350 = vmatprep.subr.mxu0 0.0
      %1351 = vmatpush1.msra.mxu0 %v317
      %1352 = vmatprep.subr.mxu0 0.0
      %1353 = vmatpush1.msra.mxu0 %v316
      %1354 = vmatprep.subr.mxu0 0.0
      %1355 = vmatpush1.msra.mxu0 %v315
      %1356 = vmatprep.subr.mxu0 0.0
      %1357 = vmatpush1.msra.mxu0 %v314
      %1358 = vmatprep.subr.mxu0 0.0
      %1359 = vmatpush1.msra.mxu0 %v313
      %1360 = vmatprep.subr.mxu0 0.0
      %1361 = vmatpush1.msra.mxu0 %v312
      %1362 = vmatprep.subr.mxu0 0.0
      %1363 = vmatpush1.msra.mxu0 %v311
      %1364 = vmatprep.subr.mxu0 0.0
      %1365 = vmatpush1.msra.mxu0 %v310
      %1366 = vmatprep.subr.mxu0 0.0
      %1367 = vmatpush1.msra.mxu0 %v309
      %1368 = vmatprep.subr.mxu0 0.0
      %1369 = vmatpush1.msra.mxu0 %v308
      %1370 = vmatprep.subr.mxu0 0.0
      %1371 = vmatpush1.msra.mxu0 %v307
      %1372 = vmatprep.subr.mxu0 0.0
      %1373 = vmatpush2.msra.mxu0 0.0
      %1374 = vmatprep.subr.mxu0 0.0
      %1375 = vmatpush2.msra.mxu0 0.0
      %1376 = vmatprep.subr.mxu0 0.0
      %1377 = vmatpush2.msra.mxu0 0.0
      %1378 = vmatprep.subr.mxu0 0.0
      %1379 = vmatpush2.msra.mxu0 0.0
      %1380 = vmatprep.subr.mxu0 0.0
      %1381 = vmatpush2.msra.mxu0 0.0
      %1382 = vmatprep.subr.mxu0 0.0
      %1383 = vmatpush2.msra.mxu0 0.0
      %1384 = vmatprep.subr.mxu0 0.0
      %1385 = vmatpush2.msra.mxu0 0.0
      %1386 = vmatprep.subr.mxu0 0.0
      %1387 = vmatpush2.msra.mxu0 0.0
      %1388 = vmatprep.subr.mxu0 0.0
      %1389 = vmatpush2.msra.mxu0 0.0
      %1390 = vmatprep.subr.mxu0 0.0
      %1391 = vmatpush2.msra.mxu0 0.0
      %1392 = vmatprep.subr.mxu0 0.0
      %1393 = vmatpush2.msra.mxu0 0.0
      %1394 = vmatprep.subr.mxu0 0.0
      %1395 = vmatpush2.msra.mxu0 0.0
      %1396 = vmatprep.subr.mxu0 0.0
      %1397 = vmatpush2.msra.mxu0 0.0
      %1398 = vmatprep.subr.mxu0 0.0
      %1399 = vmatpush2.msra.mxu0 0.0
      %1400 = vmatprep.subr.mxu0 0.0
      %1401 = vmatpush2.msra.mxu0 0.0
      %1402 = vmatprep.subr.mxu0 0.0
      %1403 = vmatpush2.msra.mxu0 0.0
      %1404 = vmatprep.mubr.f32.mxu0 0.0
      %1405 = vmatmul.mubr.f32.gmra.mxu0 %v1324
      %v1406 = vpop.f32.mrf.mxu0
      %v1407 = vadd.f32 0.0, %v1406
      %v1408 = vpop.f32.mrf.mxu0
      %1409 = vdwg.mxu0
      %v1410 = vadd.f32 %v1336, %v1407
      %v1411 = vxor.u32 %v1410, 2147483648
      %v1412 = vmul.f32 %v1411, 1.442695
      %v1413 = vpow.pop %v1412
      %v1414 = vadd.f32 %v1413, 1.0
      %v1415 = vrcp.pop %v1414
      %v1416 = vmul.f32 1.0, %v1415
      %1417 = vmatprep.subr.mxu0 0.0
      %1418 = vmatpush1.msra.mxu0 %v415
      %1419 = vmatprep.subr.mxu0 0.0
      %1420 = vmatpush1.msra.mxu0 %v414
      %1421 = vmatprep.subr.mxu0 0.0
      %1422 = vmatpush1.msra.mxu0 %v413
      %1423 = vmatprep.subr.mxu0 0.0
      %1424 = vmatpush1.msra.mxu0 %v412
      %1425 = vmatprep.subr.mxu0 0.0
      %1426 = vmatpush1.msra.mxu0 %v411
      %1427 = vmatprep.subr.mxu0 0.0
      %1428 = vmatpush1.msra.mxu0 %v410
      %1429 = vmatprep.subr.mxu0 0.0
      %1430 = vmatpush1.msra.mxu0 %v409
      %1431 = vmatprep.subr.mxu0 0.0
      %1432 = vmatpush1.msra.mxu0 %v408
      %1433 = vmatprep.subr.mxu0 0.0
      %1434 = vmatpush1.msra.mxu0 %v407
      %1435 = vmatprep.subr.mxu0 0.0
      %1436 = vmatpush1.msra.mxu0 %v406
      %1437 = vmatprep.subr.mxu0 0.0
      %1438 = vmatpush1.msra.mxu0 %v405
      %1439 = vmatprep.subr.mxu0 0.0
      %1440 = vmatpush1.msra.mxu0 %v404
      %1441 = vmatprep.subr.mxu0 0.0
      %1442 = vmatpush1.msra.mxu0 %v403
      %1443 = vmatprep.subr.mxu0 0.0
      %1444 = vmatpush1.msra.mxu0 %v402
      %1445 = vmatprep.subr.mxu0 0.0
      %1446 = vmatpush1.msra.mxu0 %v401
      %1447 = vmatprep.subr.mxu0 0.0
      %1448 = vmatpush1.msra.mxu0 %v400
      %1449 = vmatprep.subr.mxu0 0.0
      %1450 = vmatpush2.msra.mxu0 0.0
      %1451 = vmatprep.subr.mxu0 0.0
      %1452 = vmatpush2.msra.mxu0 0.0
      %1453 = vmatprep.subr.mxu0 0.0
      %1454 = vmatpush2.msra.mxu0 0.0
      %1455 = vmatprep.subr.mxu0 0.0
      %1456 = vmatpush2.msra.mxu0 0.0
      %1457 = vmatprep.subr.mxu0 0.0
      %1458 = vmatpush2.msra.mxu0 0.0
      %1459 = vmatprep.subr.mxu0 0.0
      %1460 = vmatpush2.msra.mxu0 0.0
      %1461 = vmatprep.subr.mxu0 0.0
      %1462 = vmatpush2.msra.mxu0 0.0
      %1463 = vmatprep.subr.mxu0 0.0
      %1464 = vmatpush2.msra.mxu0 0.0
      %1465 = vmatprep.subr.mxu0 0.0
      %1466 = vmatpush2.msra.mxu0 0.0
      %1467 = vmatprep.subr.mxu0 0.0
      %1468 = vmatpush2.msra.mxu0 0.0
      %1469 = vmatprep.subr.mxu0 0.0
      %1470 = vmatpush2.msra.mxu0 0.0
      %1471 = vmatprep.subr.mxu0 0.0
      %1472 = vmatpush2.msra.mxu0 0.0
      %1473 = vmatprep.subr.mxu0 0.0
      %1474 = vmatpush2.msra.mxu0 0.0
      %1475 = vmatprep.subr.mxu0 0.0
      %1476 = vmatpush2.msra.mxu0 0.0
      %1477 = vmatprep.subr.mxu0 0.0
      %1478 = vmatpush2.msra.mxu0 0.0
      %1479 = vmatprep.subr.mxu0 0.0
      %1480 = vmatpush2.msra.mxu0 0.0
      %1481 = vmatprep.mubr.f32.mxu0 0.0
      %1482 = vmatmul.mubr.f32.gmra.mxu0 %v1324
      %v1483 = vpop.f32.mrf.mxu0
      %v1484 = vadd.f32 0.0, %v1483
      %v1485 = vpop.f32.mrf.mxu0
      %1486 = vdwg.mxu0
      %v1487 = vadd.f32 %v1337, %v1484
      %v1488 = vxor.u32 %v1487, 2147483648
      %v1489 = vmul.f32 %v1488, 1.442695
      %v1490 = vpow.pop %v1489
      %v1491 = vadd.f32 %v1490, 1.0
      %v1492 = vrcp.pop %v1491
      %v1493 = vmul.f32 1.0, %v1492
      %1494 = vmatprep.subr.mxu0 0.0
      %1495 = vmatpush1.msra.mxu0 %v508
      %1496 = vmatprep.subr.mxu0 0.0
      %1497 = vmatpush1.msra.mxu0 %v507
      %1498 = vmatprep.subr.mxu0 0.0
      %1499 = vmatpush1.msra.mxu0 %v506
      %1500 = vmatprep.subr.mxu0 0.0
      %1501 = vmatpush1.msra.mxu0 %v505
      %1502 = vmatprep.subr.mxu0 0.0
      %1503 = vmatpush1.msra.mxu0 %v504
      %1504 = vmatprep.subr.mxu0 0.0
      %1505 = vmatpush1.msra.mxu0 %v503
      %1506 = vmatprep.subr.mxu0 0.0
      %1507 = vmatpush1.msra.mxu0 %v502
      %1508 = vmatprep.subr.mxu0 0.0
      %1509 = vmatpush1.msra.mxu0 %v501
      %1510 = vmatprep.subr.mxu0 0.0
      %1511 = vmatpush1.msra.mxu0 %v500
      %1512 = vmatprep.subr.mxu0 0.0
      %1513 = vmatpush1.msra.mxu0 %v499
      %1514 = vmatprep.subr.mxu0 0.0
      %1515 = vmatpush1.msra.mxu0 %v498
      %1516 = vmatprep.subr.mxu0 0.0
      %1517 = vmatpush1.msra.mxu0 %v497
      %1518 = vmatprep.subr.mxu0 0.0
      %1519 = vmatpush1.msra.mxu0 %v496
      %1520 = vmatprep.subr.mxu0 0.0
      %1521 = vmatpush1.msra.mxu0 %v495
      %1522 = vmatprep.subr.mxu0 0.0
      %1523 = vmatpush1.msra.mxu0 %v494
      %1524 = vmatprep.subr.mxu0 0.0
      %1525 = vmatpush1.msra.mxu0 %v493
      %1526 = vmatprep.subr.mxu0 0.0
      %1527 = vmatpush2.msra.mxu0 0.0
      %1528 = vmatprep.subr.mxu0 0.0
      %1529 = vmatpush2.msra.mxu0 0.0
      %1530 = vmatprep.subr.mxu0 0.0
      %1531 = vmatpush2.msra.mxu0 0.0
      %1532 = vmatprep.subr.mxu0 0.0
      %1533 = vmatpush2.msra.mxu0 0.0
      %1534 = vmatprep.subr.mxu0 0.0
      %1535 = vmatpush2.msra.mxu0 0.0
      %1536 = vmatprep.subr.mxu0 0.0
      %1537 = vmatpush2.msra.mxu0 0.0
      %1538 = vmatprep.subr.mxu0 0.0
      %1539 = vmatpush2.msra.mxu0 0.0
      %1540 = vmatprep.subr.mxu0 0.0
      %1541 = vmatpush2.msra.mxu0 0.0
      %1542 = vmatprep.subr.mxu0 0.0
      %1543 = vmatpush2.msra.mxu0 0.0
      %1544 = vmatprep.subr.mxu0 0.0
      %1545 = vmatpush2.msra.mxu0 0.0
      %1546 = vmatprep.subr.mxu0 0.0
      %1547 = vmatpush2.msra.mxu0 0.0
      %1548 = vmatprep.subr.mxu0 0.0
      %1549 = vmatpush2.msra.mxu0 0.0
      %1550 = vmatprep.subr.mxu0 0.0
      %1551 = vmatpush2.msra.mxu0 0.0
      %1552 = vmatprep.subr.mxu0 0.0
      %1553 = vmatpush2.msra.mxu0 0.0
      %1554 = vmatprep.subr.mxu0 0.0
      %1555 = vmatpush2.msra.mxu0 0.0
      %1556 = vmatprep.subr.mxu0 0.0
      %1557 = vmatpush2.msra.mxu0 0.0
      %1558 = vmatprep.mubr.f32.mxu0 0.0
      %1559 = vmatmul.mubr.f32.gmra.mxu0 %v1324
      %v1560 = vpop.f32.mrf.mxu0
      %v1561 = vadd.f32 0.0, %v1560
      %v1562 = vpop.f32.mrf.mxu0
      %1563 = vdwg.mxu0
      %v1564 = vadd.f32 %v1338, %v1561
      %v1565 = vtanh.pop %v1564
      %1566 = vmatprep.subr.mxu0 0.0
      %1567 = vmatpush1.msra.mxu0 %v596
      %1568 = vmatprep.subr.mxu0 0.0
      %1569 = vmatpush1.msra.mxu0 %v595
      %1570 = vmatprep.subr.mxu0 0.0
      %1571 = vmatpush1.msra.mxu0 %v594
      %1572 = vmatprep.subr.mxu0 0.0
      %1573 = vmatpush1.msra.mxu0 %v593
      %1574 = vmatprep.subr.mxu0 0.0
      %1575 = vmatpush1.msra.mxu0 %v592
      %1576 = vmatprep.subr.mxu0 0.0
      %1577 = vmatpush1.msra.mxu0 %v591
      %1578 = vmatprep.subr.mxu0 0.0
      %1579 = vmatpush1.msra.mxu0 %v590
      %1580 = vmatprep.subr.mxu0 0.0
      %1581 = vmatpush1.msra.mxu0 %v589
      %1582 = vmatprep.subr.mxu0 0.0
      %1583 = vmatpush1.msra.mxu0 %v588
      %1584 = vmatprep.subr.mxu0 0.0
      %1585 = vmatpush1.msra.mxu0 %v587
      %1586 = vmatprep.subr.mxu0 0.0
      %1587 = vmatpush1.msra.mxu0 %v586
      %1588 = vmatprep.subr.mxu0 0.0
      %1589 = vmatpush1.msra.mxu0 %v585
      %1590 = vmatprep.subr.mxu0 0.0
      %1591 = vmatpush1.msra.mxu0 %v584
      %1592 = vmatprep.subr.mxu0 0.0
      %1593 = vmatpush1.msra.mxu0 %v583
      %1594 = vmatprep.subr.mxu0 0.0
      %1595 = vmatpush1.msra.mxu0 %v582
      %1596 = vmatprep.subr.mxu0 0.0
      %1597 = vmatpush1.msra.mxu0 %v581
      %1598 = vmatprep.subr.mxu0 0.0
      %1599 = vmatpush2.msra.mxu0 0.0
      %1600 = vmatprep.subr.mxu0 0.0
      %1601 = vmatpush2.msra.mxu0 0.0
      %1602 = vmatprep.subr.mxu0 0.0
      %1603 = vmatpush2.msra.mxu0 0.0
      %1604 = vmatprep.subr.mxu0 0.0
      %1605 = vmatpush2.msra.mxu0 0.0
      %1606 = vmatprep.subr.mxu0 0.0
      %1607 = vmatpush2.msra.mxu0 0.0
      %1608 = vmatprep.subr.mxu0 0.0
      %1609 = vmatpush2.msra.mxu0 0.0
      %1610 = vmatprep.subr.mxu0 0.0
      %1611 = vmatpush2.msra.mxu0 0.0
      %1612 = vmatprep.subr.mxu0 0.0
      %1613 = vmatpush2.msra.mxu0 0.0
      %1614 = vmatprep.subr.mxu0 0.0
      %1615 = vmatpush2.msra.mxu0 0.0
      %1616 = vmatprep.subr.mxu0 0.0
      %1617 = vmatpush2.msra.mxu0 0.0
      %1618 = vmatprep.subr.mxu0 0.0
      %1619 = vmatpush2.msra.mxu0 0.0
      %1620 = vmatprep.subr.mxu0 0.0
      %1621 = vmatpush2.msra.mxu0 0.0
      %1622 = vmatprep.subr.mxu0 0.0
      %1623 = vmatpush2.msra.mxu0 0.0
      %1624 = vmatprep.subr.mxu0 0.0
      %1625 = vmatpush2.msra.mxu0 0.0
      %1626 = vmatprep.subr.mxu0 0.0
      %1627 = vmatpush2.msra.mxu0 0.0
      %1628 = vmatprep.subr.mxu0 0.0
      %1629 = vmatpush2.msra.mxu0 0.0
      %1630 = vmatprep.mubr.f32.mxu0 0.0
      %1631 = vmatmul.mubr.f32.gmra.mxu0 %v1324
      %v1632 = vpop.f32.mrf.mxu0
      %v1633 = vadd.f32 0.0, %v1632
      %v1634 = vpop.f32.mrf.mxu0
      %1635 = vdwg.mxu0
      %v1636 = vadd.f32 %v1339, %v1633
      %v1637 = vxor.u32 %v1636, 2147483648
      %v1638 = vmul.f32 %v1637, 1.442695
      %v1639 = vpow.pop %v1638
      %v1640 = vadd.f32 %v1639, 1.0
      %v1641 = vrcp.pop %v1640
      %v1642 = vmul.f32 1.0, %v1641
      %v1643 = vmul.f32 %v1493, %v1322
      %v1644 = vmul.f32 %v1416, %v1565
      %v1645 = vadd.f32 %v1643, %v1644
      %v1646 = vtanh.pop %v1645
      %v1647 = vmul.f32 %v1642, %v1646
      %1648 = vst [vmem:[#allocation2] sm:$0x3] %v1647
      %1649 = vst [vmem:[#allocation3] sm:$0x3] %v1645
      %p1650 = scmp.eq.s32.totalorder %s19, 1
      // Predicated region
      $region49: #{lstm_model_forward.1} parent=43 // pred_check
        %p1651 = pneg %p1650
      $region50: #{lstm_model_forward.1} parent=43 // pred_check_branch
        %1653 = sbr.rel (%p1651) target = $region52
      $region51: #{lstm_model_forward.1} parent=43 // pred_region
        %v1654 = vld [vmem:[%s4] sm:$0x1]
        %v1656 = vlaneseq
        %v1657 = vshrl.u32 %v1656, 7
        %v1658 = vsub.s32 0, %v1657
        %v1659 = vrot.slane %v1654, %v1658
        %v1661 = vmul.f32 %v1647, %v1659
        %vm1662 = vcmask 1041408
        %v1663 = vsel %vm1662, %v1661, 0.0
        %1664 = vadd.xlane.f32.xlu0 %v1663
        %v1665 = vpop.xlane.xlu0 %1664
        %v1666 = vld [vmem:[#allocation4] sm:$0x1]
        %v1668 = vlaneseq
        %v1669 = vshrl.u32 %v1668, 7
        %v1670 = vsub.s32 0, %v1669
        %v1671 = vrot.slane %v1666, %v1670
        %v1673 = vadd.f32 %v1665, %v1671
        %vm1674 = vcmask 1024
        %1675 = vst.msk [vmem:[%s6] sm:$0x3] %vm1674, %v1673
      $region52: #{lstm_model_forward.1} parent=43 // pred_fallthru
        _
      // Predicated region
      $region53: #{lstm_model_forward.1} parent=43 // pred_check
        %p1676 = pneg %p163
      $region54: #{lstm_model_forward.1} parent=43 // pred_check_branch
        %1678 = sbr.rel (%p1676) target = $region56
      $region55: #{lstm_model_forward.1} parent=43 // pred_region
        _
      $region56: #{lstm_model_forward.1} parent=43 // pred_fallthru
        _
      // Predicated region
      $region57: #{lstm_model_forward.1} parent=43 // pred_check
        %p1679 = pneg %p163
      $region58: #{lstm_model_forward.1} parent=43 // pred_check_branch
        %1681 = sbr.rel (%p1679) target = $region60
      $region59: #{lstm_model_forward.1} parent=43 // pred_region
        _
      $region60: #{lstm_model_forward.1} parent=43 // pred_fallthru
        _
    $region44: #{lstm_model_forward.1} parent=5 // pred_fallthru
      _
    %p1682 = scmp.le.s32.totalorder 2, %s14
    // Predicated region
    $region61: #{lstm_model_forward.1} parent=5 // pred_check
      %p1683 = pneg %p1682
    $region62: #{lstm_model_forward.1} parent=5 // pred_check_branch
      %1685 = sbr.rel (%p1683) target = $region64
    $region63: #{lstm_model_forward.1} parent=5 // pred_region
      %s1686 = ssub.s32 %s14, 2
    $region64: #{lstm_model_forward.1} parent=5 // pred_fallthru
      _
  $region6: #{lstm_model_forward.1} parent=0 // loop_footer
    %s18 = sadd.s32 1, %s14
  $region7: #{lstm_model_forward.1} parent=0 // loop_footer_branch
    %13 = sbr.rel target = $region3
  $region8: #{lstm_model_forward.1} parent=0 // loop_exit
    _

</llo_original>
